<compile_context>
chip_gen: v6e
topology: v6e:2x2x1
jax: 0.10.0
libtpu: 0.0.40
codegen_flags: <defaults>
</compile_context>

<pallas_src>
import jax
import jax.numpy as jnp
from jax.experimental import pallas as pl
from jax.experimental.pallas import tpu as pltpu


def ffnet_kernel(x_ref,
                 w1_ref, b1_ref,
                 w2_ref, b2_ref,
                 w3_ref, b3_ref,
                 w4_ref, b4_ref,
                 o_ref):
    """Fused 4-layer MLP forward for one batch tile (all operands resident in VMEM)."""
    cdt = w1_ref.dtype  # compute (matmul-input) dtype, e.g. bfloat16

    # x arrives in its source dtype (f32); cast to bf16 in-kernel (VPU, free-ish).
    x = x_ref[...].astype(cdt)                      # (bb, 784)

    # fc1 + relu   (f32 accumulate, f32 bias/ReLU, cast back to compute dtype)
    h = jnp.dot(x, w1_ref[...], preferred_element_type=jnp.float32) + b1_ref[...]
    h = jnp.maximum(h, 0.0).astype(cdt)
    # dropout(0.2) -> identity in eval mode

    # fc2 + relu
    h = jnp.dot(h, w2_ref[...], preferred_element_type=jnp.float32) + b2_ref[...]
    h = jnp.maximum(h, 0.0).astype(cdt)
    # dropout(0.2) -> identity in eval mode

    # fc3 + relu
    h = jnp.dot(h, w3_ref[...], preferred_element_type=jnp.float32) + b3_ref[...]
    h = jnp.maximum(h, 0.0).astype(cdt)

    # fc4 (no activation), output lane-padded to 128
    h = jnp.dot(h, w4_ref[...], preferred_element_type=jnp.float32) + b4_ref[...]
    o_ref[...] = h.astype(o_ref.dtype)


N_OUT_PAD = 128   # lane-dense output width (true output is 10)


def prepare_params(params, compute_dtype=jnp.bfloat16):
    """One-time weight preprocessing (hoisted out of the per-call path).

    params: [(w1,b1),...,(w4,b4)] with w stored as (in, out), b as (1, out).
    Returns a flat tuple of kernel-ready operands:
      * weights cast to bf16 (MXU inputs), w4 lane-padded to 128 outputs,
      * biases as f32 (added to f32 accumulator), b4 lane-padded to 128.
    """
    (w1, b1), (w2, b2), (w3, b3), (w4, b4) = params
    w4p = jnp.pad(w4, ((0, 0), (0, N_OUT_PAD - w4.shape[1])))
    b4p = jnp.pad(b4, ((0, 0), (0, N_OUT_PAD - b4.shape[1])))
    return (
        w1.astype(compute_dtype), b1.astype(jnp.float32),
        w2.astype(compute_dtype), b2.astype(jnp.float32),
        w3.astype(compute_dtype), b3.astype(jnp.float32),
        w4p.astype(compute_dtype), b4p.astype(jnp.float32),
    )


def ff_net_forward(x, prepared, *, block_b=1024):
    """x: anything reshapable to (-1, 784); prepared: output of prepare_params().

    Returns (B, 10) float32 logits.
    """
    x = x.reshape(-1, 784)                       # mirrors x.view(-1, 784); no pad/cast
    B = x.shape[0]
    w1, b1, w2, b2, w3, b3, w4, b4 = prepared

    # --- batch tile selection -------------------------------------------------
    # bb must be a multiple of 8 (sublane granule) or equal the full batch dim.
    B8 = ((B + 7) // 8) * 8
    bb = min(block_b, B8)
    # v7x megacore: keep >= 2 grid steps when the batch is large enough so the
    # "parallel" axis can shard across both TensorCores.
    if B8 >= 512:
        half = ((B8 // 2 + 7) // 8) * 8
        bb = min(bb, half)
    # Tiny batches: use the exact batch as the (single) block — full-dim blocks
    # are always legal and avoid any ragged-row handling for the small case.
    if bb > B:
        bb = B
    grid = (pl.cdiv(B, bb),)

    def batch_spec(feat):
        return pl.BlockSpec((bb, feat), lambda i: (i, 0))

    def full_spec(shape):
        nd = len(shape)
        return pl.BlockSpec(shape, lambda i: (0,) * nd)

    out = pl.pallas_call(
        ffnet_kernel,
        out_shape=jax.ShapeDtypeStruct((B, N_OUT_PAD), jnp.float32),
        grid_spec=pltpu.PrefetchScalarGridSpec(
            num_scalar_prefetch=0,
            grid=grid,
            in_specs=[
                batch_spec(784),
                full_spec(w1.shape), full_spec(b1.shape),
                full_spec(w2.shape), full_spec(b2.shape),
                full_spec(w3.shape), full_spec(b3.shape),
                full_spec(w4.shape), full_spec(b4.shape),
            ],
            out_specs=batch_spec(N_OUT_PAD),
        ),
        compiler_params=pltpu.CompilerParams(
            dimension_semantics=("parallel",),
            vmem_limit_bytes=48 * 1024 * 1024,   # headroom for bb up to ~2048
        ),
    )(x, w1, b1, w2, b2, w3, b3, w4, b4)

    return out[:, :10]


def init_params(key):
    """Deterministic init matching nn.Linear shapes; weights stored as (in, out)."""
    dims = [(784, 512), (512, 256), (256, 128), (128, 10)]
    params = []
    for (fan_in, fan_out) in dims:
        key, kw, kb = jax.random.split(key, 3)
        bound = 1.0 / jnp.sqrt(fan_in)
        w = jax.random.uniform(kw, (fan_in, fan_out), jnp.float32, -bound, bound)
        b = jax.random.uniform(kb, (1, fan_out), jnp.float32, -bound, bound)
        params.append((w, b))
    return params


def ff_net_reference(x, params, compute_dtype=jnp.bfloat16):
    """Pure-JAX reference (same bf16-input / f32-accumulate recipe) for correctness."""
    x = x.reshape(-1, 784)
    (w1, b1), (w2, b2), (w3, b3), (w4, b4) = params

    def lin(h, w, b):
        return jnp.dot(h.astype(compute_dtype), w.astype(compute_dtype),
                       preferred_element_type=jnp.float32) + b

    h = jnp.maximum(lin(x, w1, b1), 0.0)
    h = jnp.maximum(lin(h, w2, b2), 0.0)
    h = jnp.maximum(lin(h, w3, b3), 0.0)
    return lin(h, w4, b4)


if __name__ == "__main__":
    key = jax.random.PRNGKey(0)
    kx, kp = jax.random.split(key)

    # small MNIST-like batch: (2, 1, 28, 28) -> view(-1, 784)
    x = jax.random.normal(kx, (2, 1, 28, 28), jnp.float32)
    params = init_params(kp)
    prepared = prepare_params(params)          # one-time weight prep (not per call)

    out = ff_net_forward(x, prepared)
    out = jax.block_until_ready(out)

    ref = ff_net_reference(x, params)
    assert out.shape == (2, 10), out.shape
    assert jnp.allclose(out, ref, atol=2e-2, rtol=2e-2), "mismatch vs reference"

    print("KERNEL_OK")
</pallas_src>

<mosaic_0001>
module attributes {stable_mosaic.version = 11 : i64} {
  func.func @ffnet_kernel(%arg0: i32, %arg1: memref<2x784xf32, #tpu.memory_space<vmem>>, %arg2: memref<784x512xbf16, #tpu.memory_space<vmem>>, %arg3: memref<1x512xf32, #tpu.memory_space<vmem>>, %arg4: memref<512x256xbf16, #tpu.memory_space<vmem>>, %arg5: memref<1x256xf32, #tpu.memory_space<vmem>>, %arg6: memref<256x128xbf16, #tpu.memory_space<vmem>>, %arg7: memref<1x128xf32, #tpu.memory_space<vmem>>, %arg8: memref<128x128xbf16, #tpu.memory_space<vmem>>, %arg9: memref<1x128xf32, #tpu.memory_space<vmem>>, %arg10: memref<2x128xf32, #tpu.memory_space<vmem>>) attributes {dimension_semantics = [#tpu.dimension_semantics<parallel>], iteration_bounds = array<i64: 1>, scalar_prefetch = 0 : i64, scratch_operands = 0 : i64, tpu.core_type = #tpu.core_type<tc>, window_params = [{transform_indices = @transform_0, window_bounds = array<i64: 2, 784>}, {pipeline_mode = #tpu.pipeline_mode<synchronous>, transform_indices = @transform_1, window_bounds = array<i64: 784, 512>}, {pipeline_mode = #tpu.pipeline_mode<synchronous>, transform_indices = @transform_2, window_bounds = array<i64: 1, 512>}, {pipeline_mode = #tpu.pipeline_mode<synchronous>, transform_indices = @transform_3, window_bounds = array<i64: 512, 256>}, {pipeline_mode = #tpu.pipeline_mode<synchronous>, transform_indices = @transform_4, window_bounds = array<i64: 1, 256>}, {pipeline_mode = #tpu.pipeline_mode<synchronous>, transform_indices = @transform_5, window_bounds = array<i64: 256, 128>}, {pipeline_mode = #tpu.pipeline_mode<synchronous>, transform_indices = @transform_6, window_bounds = array<i64: 1, 128>}, {pipeline_mode = #tpu.pipeline_mode<synchronous>, transform_indices = @transform_7, window_bounds = array<i64: 128, 128>}, {pipeline_mode = #tpu.pipeline_mode<synchronous>, transform_indices = @transform_8, window_bounds = array<i64: 1, 128>}, {transform_indices = @transform_9, window_bounds = array<i64: 2, 128>}]} {
    %c0 = arith.constant 0 : index
    %c0_0 = arith.constant 0 : index
    %0 = vector.load %arg1[%c0, %c0_0] : memref<2x784xf32, #tpu.memory_space<vmem>>, vector<2x784xf32>
    %1 = arith.truncf %0 : vector<2x784xf32> to vector<2x784xbf16>
    %c0_1 = arith.constant 0 : index
    %c0_2 = arith.constant 0 : index
    %2 = vector.load %arg2[%c0_1, %c0_2] : memref<784x512xbf16, #tpu.memory_space<vmem>>, vector<784x512xbf16>
    %cst = arith.constant dense<0.000000e+00> : vector<2x512xf32>
    %3 = tpu.matmul %1, %2, %cst {dimension_numbers = #tpu.dot_dimension_numbers<[1], [0], [0], [1], [0, 0, 1, 1], [], []>} : vector<2x784xbf16>, vector<784x512xbf16>, vector<2x512xf32> -> vector<2x512xf32>
    %c0_3 = arith.constant 0 : index
    %c0_4 = arith.constant 0 : index
    %4 = vector.load %arg3[%c0_3, %c0_4] : memref<1x512xf32, #tpu.memory_space<vmem>>, vector<1x512xf32>
    %5 = vector.broadcast %4 : vector<1x512xf32> to vector<2x512xf32>
    %6 = arith.addf %3, %5 : vector<2x512xf32>
    %cst_5 = arith.constant 0.000000e+00 : f32
    %7 = vector.broadcast %cst_5 : f32 to vector<2x512xf32>
    %8 = arith.maximumf %6, %7 : vector<2x512xf32>
    %9 = arith.truncf %8 : vector<2x512xf32> to vector<2x512xbf16>
    %c0_6 = arith.constant 0 : index
    %c0_7 = arith.constant 0 : index
    %10 = vector.load %arg4[%c0_6, %c0_7] : memref<512x256xbf16, #tpu.memory_space<vmem>>, vector<512x256xbf16>
    %cst_8 = arith.constant dense<0.000000e+00> : vector<2x256xf32>
    %11 = tpu.matmul %9, %10, %cst_8 {dimension_numbers = #tpu.dot_dimension_numbers<[1], [0], [0], [1], [0, 0, 1, 1], [], []>} : vector<2x512xbf16>, vector<512x256xbf16>, vector<2x256xf32> -> vector<2x256xf32>
    %c0_9 = arith.constant 0 : index
    %c0_10 = arith.constant 0 : index
    %12 = vector.load %arg5[%c0_9, %c0_10] : memref<1x256xf32, #tpu.memory_space<vmem>>, vector<1x256xf32>
    %13 = vector.broadcast %12 : vector<1x256xf32> to vector<2x256xf32>
    %14 = arith.addf %11, %13 : vector<2x256xf32>
    %cst_11 = arith.constant 0.000000e+00 : f32
    %15 = vector.broadcast %cst_11 : f32 to vector<2x256xf32>
    %16 = arith.maximumf %14, %15 : vector<2x256xf32>
    %17 = arith.truncf %16 : vector<2x256xf32> to vector<2x256xbf16>
    %c0_12 = arith.constant 0 : index
    %c0_13 = arith.constant 0 : index
    %18 = vector.load %arg6[%c0_12, %c0_13] : memref<256x128xbf16, #tpu.memory_space<vmem>>, vector<256x128xbf16>
    %cst_14 = arith.constant dense<0.000000e+00> : vector<2x128xf32>
    %19 = tpu.matmul %17, %18, %cst_14 {dimension_numbers = #tpu.dot_dimension_numbers<[1], [0], [0], [1], [0, 0, 1, 1], [], []>} : vector<2x256xbf16>, vector<256x128xbf16>, vector<2x128xf32> -> vector<2x128xf32>
    %c0_15 = arith.constant 0 : index
    %c0_16 = arith.constant 0 : index
    %20 = vector.load %arg7[%c0_15, %c0_16] : memref<1x128xf32, #tpu.memory_space<vmem>>, vector<1x128xf32>
    %21 = vector.broadcast %20 : vector<1x128xf32> to vector<2x128xf32>
    %22 = arith.addf %19, %21 : vector<2x128xf32>
    %cst_17 = arith.constant 0.000000e+00 : f32
    %23 = vector.broadcast %cst_17 : f32 to vector<2x128xf32>
    %24 = arith.maximumf %22, %23 : vector<2x128xf32>
    %25 = arith.truncf %24 : vector<2x128xf32> to vector<2x128xbf16>
    %c0_18 = arith.constant 0 : index
    %c0_19 = arith.constant 0 : index
    %26 = vector.load %arg8[%c0_18, %c0_19] : memref<128x128xbf16, #tpu.memory_space<vmem>>, vector<128x128xbf16>
    %cst_20 = arith.constant dense<0.000000e+00> : vector<2x128xf32>
    %27 = tpu.matmul %25, %26, %cst_20 {dimension_numbers = #tpu.dot_dimension_numbers<[1], [0], [0], [1], [0, 0, 1, 1], [], []>} : vector<2x128xbf16>, vector<128x128xbf16>, vector<2x128xf32> -> vector<2x128xf32>
    %c0_21 = arith.constant 0 : index
    %c0_22 = arith.constant 0 : index
    %28 = vector.load %arg9[%c0_21, %c0_22] : memref<1x128xf32, #tpu.memory_space<vmem>>, vector<1x128xf32>
    %29 = vector.broadcast %28 : vector<1x128xf32> to vector<2x128xf32>
    %30 = arith.addf %27, %29 : vector<2x128xf32>
    %c0_23 = arith.constant 0 : index
    %c0_24 = arith.constant 0 : index
    %31 = vector.load %arg10[%c0_23, %c0_24] : memref<2x128xf32, #tpu.memory_space<vmem>>, vector<2x128xf32>
    tpu.vector_store %arg10[%c0_23, %c0_24], %30 {strides = array<i32>} : memref<2x128xf32, #tpu.memory_space<vmem>>, vector<2x128xf32>,
    return
  }
  func.func @transform_0(%arg0: i32) -> (i32, i32) {
    %c0_i32 = arith.constant 0 : i32
    %c0_i32_0 = arith.constant 0 : i32
    return %arg0, %c0_i32 : i32, i32
  }
  func.func @transform_1(%arg0: i32) -> (i32, i32) {
    %c0_i32 = arith.constant 0 : i32
    %c0_i32_0 = arith.constant 0 : i32
    %c0_i32_1 = arith.constant 0 : i32
    return %c0_i32, %c0_i32_0 : i32, i32
  }
  func.func @transform_2(%arg0: i32) -> (i32, i32) {
    %c0_i32 = arith.constant 0 : i32
    %c0_i32_0 = arith.constant 0 : i32
    %c0_i32_1 = arith.constant 0 : i32
    return %c0_i32, %c0_i32_0 : i32, i32
  }
  func.func @transform_3(%arg0: i32) -> (i32, i32) {
    %c0_i32 = arith.constant 0 : i32
    %c0_i32_0 = arith.constant 0 : i32
    %c0_i32_1 = arith.constant 0 : i32
    return %c0_i32, %c0_i32_0 : i32, i32
  }
  func.func @transform_4(%arg0: i32) -> (i32, i32) {
    %c0_i32 = arith.constant 0 : i32
    %c0_i32_0 = arith.constant 0 : i32
    %c0_i32_1 = arith.constant 0 : i32
    return %c0_i32, %c0_i32_0 : i32, i32
  }
  func.func @transform_5(%arg0: i32) -> (i32, i32) {
    %c0_i32 = arith.constant 0 : i32
    %c0_i32_0 = arith.constant 0 : i32
    %c0_i32_1 = arith.constant 0 : i32
    return %c0_i32, %c0_i32_0 : i32, i32
  }
  func.func @transform_6(%arg0: i32) -> (i32, i32) {
    %c0_i32 = arith.constant 0 : i32
    %c0_i32_0 = arith.constant 0 : i32
    %c0_i32_1 = arith.constant 0 : i32
    return %c0_i32, %c0_i32_0 : i32, i32
  }
  func.func @transform_7(%arg0: i32) -> (i32, i32) {
    %c0_i32 = arith.constant 0 : i32
    %c0_i32_0 = arith.constant 0 : i32
    %c0_i32_1 = arith.constant 0 : i32
    return %c0_i32, %c0_i32_0 : i32, i32
  }
  func.func @transform_8(%arg0: i32) -> (i32, i32) {
    %c0_i32 = arith.constant 0 : i32
    %c0_i32_0 = arith.constant 0 : i32
    %c0_i32_1 = arith.constant 0 : i32
    return %c0_i32, %c0_i32_0 : i32, i32
  }
  func.func @transform_9(%arg0: i32) -> (i32, i32) {
    %c0_i32 = arith.constant 0 : i32
    %c0_i32_0 = arith.constant 0 : i32
    return %arg0, %c0_i32 : i32, i32
  }
}

</mosaic_0001>

<llo_original>
// kernel: tpu_custom_call.1
$region0: #{tpu_custom_call.1}
  #allocation0 [shape = 'u32[]', space=smem, size = 0x4, offset = 0x4, fixed_abs, tag = 'smem constant byte address 0x4 - core index']
  #allocation1 [shape = 'u32[144,128]{1,0:T(1,128)}', space=vmem, size = 0x12000, scoped, tag = 'internal scratch']
  %s0 = inlined_call_operand.hbm [shape: f32[2,784], index: 0, kind: input, shape index: {}]
  %s1 = inlined_call_operand.hbm [shape: bf16[784,512], index: 1, kind: input, shape index: {}]
  %s2 = inlined_call_operand.hbm [shape: f32[1,512], index: 2, kind: input, shape index: {}]
  %s3 = inlined_call_operand.hbm [shape: bf16[512,256], index: 3, kind: input, shape index: {}]
  %s4 = inlined_call_operand.vmem [shape: f32[1,256], index: 4, kind: input, shape index: {}]
  %s5 = inlined_call_operand.hbm [shape: bf16[256,128], index: 5, kind: input, shape index: {}]
  %s6 = inlined_call_operand.vmem [shape: f32[1,128], index: 6, kind: input, shape index: {}]
  %s7 = inlined_call_operand.hbm [shape: bf16[128,128], index: 7, kind: input, shape index: {}]
  %s8 = inlined_call_operand.vmem [shape: f32[1,128], index: 8, kind: input, shape index: {}]
  %s9 = inlined_call_operand.hbm [shape: f32[2,128], index: 9, kind: output, shape index: {}]
  %s10 = sld [smem:[#allocation0]]
  $region70: #{tpu_custom_call.1} parent=0
    _
  %s12 = ssub.s32 1, %s10
  %s13 = scalar_select 0, %s12, %s10
  $region1: #{tpu_custom_call.1} parent=0
    #allocation2 [shape = 'u8[7168]{0}', space=vmem, size = 0x1c00, scoped, tag = 'input window, operand 0, single buffered']
    #allocation3 [shape = 's32[1]{0}', space=sflag, size = 0x4, scoped, tag = 'scoped memory for tpu_custom_call.1']
    #allocation4 [shape = 's32[1]{0}', space=sflag, size = 0x4, scoped, tag = 'scoped memory for tpu_custom_call.1']
    #allocation5 [shape = 'u8[802816]{0}', space=vmem, size = 0xc4000, scoped, tag = 'input window, operand 1, single buffered']
    #allocation6 [shape = 's32[1]{0}', space=sflag, size = 0x4, scoped, tag = 'scoped memory for tpu_custom_call.1']
    #allocation7 [shape = 'u8[2048]{0}', space=vmem, size = 0x800, scoped, tag = 'input window, operand 2, single buffered']
    #allocation8 [shape = 'u8[262144]{0}', space=vmem, size = 0x40000, scoped, tag = 'input window, operand 3, single buffered']
    #allocation9 [shape = 's32[1]{0}', space=sflag, size = 0x4, scoped, tag = 'scoped memory for tpu_custom_call.1']
    #allocation10 [shape = 'u8[65536]{0}', space=vmem, size = 0x10000, scoped, tag = 'input window, operand 5, single buffered']
    #allocation11 [shape = 'u8[32768]{0}', space=vmem, size = 0x8000, scoped, tag = 'input window, operand 7, single buffered']
    #allocation12 [shape = 's32[1]{0}', space=sflag, size = 0x4, scoped, tag = 'scoped memory for tpu_custom_call.1']
    #allocation13 [shape = 'u8[1024]{0}', space=vmem, size = 0x400, scoped, tag = 'output window, operand 0, single buffered']
    %14 = vsyncpa [#allocation3], 0
    %15 = vsyncpa [#allocation6], 0
    %16 = vsyncpa [#allocation9], 0
    %17 = vsyncpa [#allocation12], 0
    %18 = vsyncpa [#allocation4], 0
    // Predicated region
    $region2: #{tpu_custom_call.1} parent=1 // pred_check
      _
    $region3: #{tpu_custom_call.1} parent=1 // pred_check_branch
      %20 = sbr.rel (0) target = $region5
    $region4: #{tpu_custom_call.1} parent=1 // pred_region
      %s22 = ssub.s32 224, 224
      %23 = vsyncadd [#allocation3], %s22
      %s25 = sshll.u32 [#allocation2], 4
      %s26 = int_to_ptr.vmem [resolvable:$true] %s25
      %28 = dma.hbm_to_vmem [thread:$0]  %s0, 224, %s26, [#allocation3]
    $region5: #{tpu_custom_call.1} parent=1 // pred_fallthru
      _
    // Predicated region
    $region6: #{tpu_custom_call.1} parent=1 // pred_check
      _
    $region7: #{tpu_custom_call.1} parent=1 // pred_check_branch
      %30 = sbr.rel (0) target = $region9
    $region8: #{tpu_custom_call.1} parent=1 // pred_region
      %s32 = ssub.s32 25088, 25088
      %33 = vsyncadd [#allocation6], %s32
      %s34 = sshll.u32 [#allocation5], 4
      %s35 = int_to_ptr.vmem [resolvable:$true] %s34
      %40 = dma.hbm_to_vmem [thread:$0]  %s1, 25088, %s35, [#allocation6], 256, 256, 16
    $region9: #{tpu_custom_call.1} parent=1 // pred_fallthru
      _
    // Predicated region
    $region10: #{tpu_custom_call.1} parent=1 // pred_check
      _
    $region11: #{tpu_custom_call.1} parent=1 // pred_check_branch
      %42 = sbr.rel (0) target = $region13
    $region12: #{tpu_custom_call.1} parent=1 // pred_region
      %s44 = ssub.s32 64, 64
      %45 = vsyncadd [#allocation6], %s44
      %s47 = sshll.u32 [#allocation7], 4
      %s48 = int_to_ptr.vmem [resolvable:$true] %s47
      %50 = dma.hbm_to_vmem [thread:$0]  %s2, 64, %s48, [#allocation6]
    $region13: #{tpu_custom_call.1} parent=1 // pred_fallthru
      _
    // Predicated region
    $region14: #{tpu_custom_call.1} parent=1 // pred_check
      _
    $region15: #{tpu_custom_call.1} parent=1 // pred_check_branch
      %52 = sbr.rel (0) target = $region17
    $region16: #{tpu_custom_call.1} parent=1 // pred_region
      %s54 = ssub.s32 8192, 8192
      %55 = vsyncadd [#allocation9], %s54
      %s56 = sshll.u32 [#allocation8], 4
      %s57 = int_to_ptr.vmem [resolvable:$true] %s56
      %62 = dma.hbm_to_vmem [thread:$0]  %s3, 8192, %s57, [#allocation9], 128, 128, 8
    $region17: #{tpu_custom_call.1} parent=1 // pred_fallthru
      _
    // Predicated region
    $region18: #{tpu_custom_call.1} parent=1 // pred_check
      _
    $region19: #{tpu_custom_call.1} parent=1 // pred_check_branch
      %64 = sbr.rel (0) target = $region21
    $region20: #{tpu_custom_call.1} parent=1 // pred_region
      _
    $region21: #{tpu_custom_call.1} parent=1 // pred_fallthru
      _
    // Predicated region
    $region22: #{tpu_custom_call.1} parent=1 // pred_check
      _
    $region23: #{tpu_custom_call.1} parent=1 // pred_check_branch
      %66 = sbr.rel (0) target = $region25
    $region24: #{tpu_custom_call.1} parent=1 // pred_region
      %s68 = ssub.s32 2048, 2048
      %69 = vsyncadd [#allocation9], %s68
      %s70 = sshll.u32 [#allocation10], 4
      %s71 = int_to_ptr.vmem [resolvable:$true] %s70
      %76 = dma.hbm_to_vmem [thread:$0]  %s5, 2048, %s71, [#allocation9], 64, 64, 4
    $region25: #{tpu_custom_call.1} parent=1 // pred_fallthru
      _
    // Predicated region
    $region26: #{tpu_custom_call.1} parent=1 // pred_check
      _
    $region27: #{tpu_custom_call.1} parent=1 // pred_check_branch
      %78 = sbr.rel (0) target = $region29
    $region28: #{tpu_custom_call.1} parent=1 // pred_region
      _
    $region29: #{tpu_custom_call.1} parent=1 // pred_fallthru
      _
    // Predicated region
    $region30: #{tpu_custom_call.1} parent=1 // pred_check
      _
    $region31: #{tpu_custom_call.1} parent=1 // pred_check_branch
      %80 = sbr.rel (0) target = $region33
    $region32: #{tpu_custom_call.1} parent=1 // pred_region
      %s82 = ssub.s32 1024, 1024
      %83 = vsyncadd [#allocation12], %s82
      %s84 = sshll.u32 [#allocation11], 4
      %s85 = int_to_ptr.vmem [resolvable:$true] %s84
      %90 = dma.hbm_to_vmem [thread:$0]  %s7, 1024, %s85, [#allocation12], 64, 64, 4
    $region33: #{tpu_custom_call.1} parent=1 // pred_fallthru
      _
    // Predicated region
    $region34: #{tpu_custom_call.1} parent=1 // pred_check
      _
    $region35: #{tpu_custom_call.1} parent=1 // pred_check_branch
      %92 = sbr.rel (0) target = $region37
    $region36: #{tpu_custom_call.1} parent=1 // pred_region
      _
    $region37: #{tpu_custom_call.1} parent=1 // pred_fallthru
      _
    // Predicated region
    $region38: #{tpu_custom_call.1} parent=1 // pred_check
      _
    $region39: #{tpu_custom_call.1} parent=1 // pred_check_branch
      %94 = sbr.rel (0) target = $region41
    $region40: #{tpu_custom_call.1} parent=1 // pred_region
      %95 = dma.done [#allocation3], 224
    $region41: #{tpu_custom_call.1} parent=1 // pred_fallthru
      _
    // Predicated region
    $region42: #{tpu_custom_call.1} parent=1 // pred_check
      _
    $region43: #{tpu_custom_call.1} parent=1 // pred_check_branch
      %97 = sbr.rel (0) target = $region45
    $region44: #{tpu_custom_call.1} parent=1 // pred_region
      %98 = dma.done [#allocation6], 25088
    $region45: #{tpu_custom_call.1} parent=1 // pred_fallthru
      _
    // Predicated region
    $region46: #{tpu_custom_call.1} parent=1 // pred_check
      _
    $region47: #{tpu_custom_call.1} parent=1 // pred_check_branch
      %100 = sbr.rel (0) target = $region49
    $region48: #{tpu_custom_call.1} parent=1 // pred_region
      %101 = dma.done [#allocation6], 64
    $region49: #{tpu_custom_call.1} parent=1 // pred_fallthru
      _
    // Predicated region
    $region50: #{tpu_custom_call.1} parent=1 // pred_check
      _
    $region51: #{tpu_custom_call.1} parent=1 // pred_check_branch
      %103 = sbr.rel (0) target = $region53
    $region52: #{tpu_custom_call.1} parent=1 // pred_region
      %104 = dma.done [#allocation9], 8192
    $region53: #{tpu_custom_call.1} parent=1 // pred_fallthru
      _
    // Predicated region
    $region54: #{tpu_custom_call.1} parent=1 // pred_check
      _
    $region55: #{tpu_custom_call.1} parent=1 // pred_check_branch
      %106 = sbr.rel (0) target = $region57
    $region56: #{tpu_custom_call.1} parent=1 // pred_region
      %107 = dma.done [#allocation9], 2048
    $region57: #{tpu_custom_call.1} parent=1 // pred_fallthru
      _
    // Predicated region
    $region58: #{tpu_custom_call.1} parent=1 // pred_check
      _
    $region59: #{tpu_custom_call.1} parent=1 // pred_check_branch
      %109 = sbr.rel (0) target = $region61
    $region60: #{tpu_custom_call.1} parent=1 // pred_region
      %110 = dma.done [#allocation12], 1024
    $region61: #{tpu_custom_call.1} parent=1 // pred_fallthru
      _
    %v112 = vld [vmem:[#allocation2] sm:$0xff]
    %v113 = vld [vmem:[#allocation2 + $0x8] sm:$0x3f]
    %v116 = vcombine.high %v112, %v112
    %v118 = vunpack.c.l.s4 1983009808
    %v119 = vunpack.c.0.s8 %v118
    %v120 = vlaneseq
    %v121 = vshrl.u32 %v120, 7
    %v122 = vsub.s32 %v119, %v121
    %v123 = vrot.slane %v112, %v122
    %v125 = vunpack.c.l.s4 1983009808
    %v126 = vunpack.c.0.s8 %v125
    %v127 = vlaneseq
    %v128 = vshrl.u32 %v127, 7
    %v129 = vsub.s32 %v126, %v128
    %v130 = vrot.slane %v116, %v129
    %v131 = vcombine.high %v123, %v123
    %v132 = vcombine.high %v130, %v130
    %v133 = vcombine.high %v113, %v113
    %v135 = vunpack.c.l.s4 1983009808
    %v136 = vunpack.c.0.s8 %v135
    %v137 = vlaneseq
    %v138 = vshrl.u32 %v137, 7
    %v139 = vsub.s32 %v136, %v138
    %v140 = vrot.slane %v113, %v139
    %v142 = vunpack.c.l.s4 1983009808
    %v143 = vunpack.c.0.s8 %v142
    %v144 = vlaneseq
    %v145 = vshrl.u32 %v144, 7
    %v146 = vsub.s32 %v143, %v145
    %v147 = vrot.slane %v133, %v146
    %v148 = vcombine.high %v140, %v140
    %v156 = vpack.c.bf16 %v123, %v123
    %v157 = vpack.c.bf16 %v131, %v131
    %v158 = vpack.c.bf16 %v130, %v130
    %v159 = vpack.c.bf16 %v132, %v132
    %v160 = vpack.c.bf16 %v140, %v140
    %v161 = vpack.c.bf16 %v148, %v148
    %v162 = vpack.c.bf16 %v147, %v147
    %v163 = vld [vmem:[#allocation5] sm:$0xff]
    %v164 = vld [vmem:[#allocation5 + $0x8] sm:$0xff]
    %v165 = vld [vmem:[#allocation5 + $0x10] sm:$0xff]
    %v166 = vld [vmem:[#allocation5 + $0x18] sm:$0xff]
    %v167 = vld [vmem:[#allocation5 + $0x20] sm:$0xff]
    %v168 = vld [vmem:[#allocation5 + $0x28] sm:$0xff]
    %v169 = vld [vmem:[#allocation5 + $0x30] sm:$0xff]
    %v170 = vld [vmem:[#allocation5 + $0x38] sm:$0xff]
    %v171 = vld [vmem:[#allocation5 + $0x40] sm:$0xff]
    %v172 = vld [vmem:[#allocation5 + $0x48] sm:$0xff]
    %v173 = vld [vmem:[#allocation5 + $0x50] sm:$0xff]
    %v174 = vld [vmem:[#allocation5 + $0x58] sm:$0xff]
    %v175 = vld [vmem:[#allocation5 + $0x60] sm:$0xff]
    %v176 = vld [vmem:[#allocation5 + $0x68] sm:$0xff]
    %v177 = vld [vmem:[#allocation5 + $0x70] sm:$0xff]
    %v178 = vld [vmem:[#allocation5 + $0x78] sm:$0xff]
    %v179 = vld [vmem:[#allocation5 + $0x80] sm:$0xff]
    %v180 = vld [vmem:[#allocation5 + $0x88] sm:$0xff]
    %v181 = vld [vmem:[#allocation5 + $0x90] sm:$0xff]
    %v182 = vld [vmem:[#allocation5 + $0x98] sm:$0xff]
    %v183 = vld [vmem:[#allocation5 + $0xa0] sm:$0xff]
    %v184 = vld [vmem:[#allocation5 + $0xa8] sm:$0xff]
    %v185 = vld [vmem:[#allocation5 + $0xb0] sm:$0xff]
    %v186 = vld [vmem:[#allocation5 + $0xb8] sm:$0xff]
    %v187 = vld [vmem:[#allocation5 + $0xc0] sm:$0xff]
    %v188 = vld [vmem:[#allocation5 + $0xc8] sm:$0xff]
    %v189 = vld [vmem:[#allocation5 + $0xd0] sm:$0xff]
    %v190 = vld [vmem:[#allocation5 + $0xd8] sm:$0xff]
    %v191 = vld [vmem:[#allocation5 + $0xe0] sm:$0xff]
    %v192 = vld [vmem:[#allocation5 + $0xe8] sm:$0xff]
    %v193 = vld [vmem:[#allocation5 + $0xf0] sm:$0xff]
    %v194 = vld [vmem:[#allocation5 + $0xf8] sm:$0xff]
    %v195 = vld [vmem:[#allocation5 + $0x100] sm:$0xff]
    %v196 = vld [vmem:[#allocation5 + $0x108] sm:$0xff]
    %v197 = vld [vmem:[#allocation5 + $0x110] sm:$0xff]
    %v198 = vld [vmem:[#allocation5 + $0x118] sm:$0xff]
    %v199 = vld [vmem:[#allocation5 + $0x120] sm:$0xff]
    %v200 = vld [vmem:[#allocation5 + $0x128] sm:$0xff]
    %v201 = vld [vmem:[#allocation5 + $0x130] sm:$0xff]
    %v202 = vld [vmem:[#allocation5 + $0x138] sm:$0xff]
    %v203 = vld [vmem:[#allocation5 + $0x140] sm:$0xff]
    %v204 = vld [vmem:[#allocation5 + $0x148] sm:$0xff]
    %v205 = vld [vmem:[#allocation5 + $0x150] sm:$0xff]
    %v206 = vld [vmem:[#allocation5 + $0x158] sm:$0xff]
    %v207 = vld [vmem:[#allocation5 + $0x160] sm:$0xff]
    %v208 = vld [vmem:[#allocation5 + $0x168] sm:$0xff]
    %v209 = vld [vmem:[#allocation5 + $0x170] sm:$0xff]
    %v210 = vld [vmem:[#allocation5 + $0x178] sm:$0xff]
    %v211 = vld [vmem:[#allocation5 + $0x180] sm:$0xff]
    %v212 = vld [vmem:[#allocation5 + $0x188] sm:$0xff]
    %v213 = vld [vmem:[#allocation5 + $0x190] sm:$0xff]
    %v214 = vld [vmem:[#allocation5 + $0x198] sm:$0xff]
    %v215 = vld [vmem:[#allocation5 + $0x1a0] sm:$0xff]
    %v216 = vld [vmem:[#allocation5 + $0x1a8] sm:$0xff]
    %v217 = vld [vmem:[#allocation5 + $0x1b0] sm:$0xff]
    %v218 = vld [vmem:[#allocation5 + $0x1b8] sm:$0xff]
    %v219 = vld [vmem:[#allocation5 + $0x1c0] sm:$0xff]
    %v220 = vld [vmem:[#allocation5 + $0x1c8] sm:$0xff]
    %v221 = vld [vmem:[#allocation5 + $0x1d0] sm:$0xff]
    %v222 = vld [vmem:[#allocation5 + $0x1d8] sm:$0xff]
    %v223 = vld [vmem:[#allocation5 + $0x1e0] sm:$0xff]
    %v224 = vld [vmem:[#allocation5 + $0x1e8] sm:$0xff]
    %v225 = vld [vmem:[#allocation5 + $0x1f0] sm:$0xff]
    %v226 = vld [vmem:[#allocation5 + $0x1f8] sm:$0xff]
    %v227 = vld [vmem:[#allocation5 + $0x200] sm:$0xff]
    %v228 = vld [vmem:[#allocation5 + $0x208] sm:$0xff]
    %v229 = vld [vmem:[#allocation5 + $0x210] sm:$0xff]
    %v230 = vld [vmem:[#allocation5 + $0x218] sm:$0xff]
    %v231 = vld [vmem:[#allocation5 + $0x220] sm:$0xff]
    %v232 = vld [vmem:[#allocation5 + $0x228] sm:$0xff]
    %v233 = vld [vmem:[#allocation5 + $0x230] sm:$0xff]
    %v234 = vld [vmem:[#allocation5 + $0x238] sm:$0xff]
    %v235 = vld [vmem:[#allocation5 + $0x240] sm:$0xff]
    %v236 = vld [vmem:[#allocation5 + $0x248] sm:$0xff]
    %v237 = vld [vmem:[#allocation5 + $0x250] sm:$0xff]
    %v238 = vld [vmem:[#allocation5 + $0x258] sm:$0xff]
    %v239 = vld [vmem:[#allocation5 + $0x260] sm:$0xff]
    %v240 = vld [vmem:[#allocation5 + $0x268] sm:$0xff]
    %v241 = vld [vmem:[#allocation5 + $0x270] sm:$0xff]
    %v242 = vld [vmem:[#allocation5 + $0x278] sm:$0xff]
    %v243 = vld [vmem:[#allocation5 + $0x280] sm:$0xff]
    %v244 = vld [vmem:[#allocation5 + $0x288] sm:$0xff]
    %v245 = vld [vmem:[#allocation5 + $0x290] sm:$0xff]
    %v246 = vld [vmem:[#allocation5 + $0x298] sm:$0xff]
    %v247 = vld [vmem:[#allocation5 + $0x2a0] sm:$0xff]
    %v248 = vld [vmem:[#allocation5 + $0x2a8] sm:$0xff]
    %v249 = vld [vmem:[#allocation5 + $0x2b0] sm:$0xff]
    %v250 = vld [vmem:[#allocation5 + $0x2b8] sm:$0xff]
    %v251 = vld [vmem:[#allocation5 + $0x2c0] sm:$0xff]
    %v252 = vld [vmem:[#allocation5 + $0x2c8] sm:$0xff]
    %v253 = vld [vmem:[#allocation5 + $0x2d0] sm:$0xff]
    %v254 = vld [vmem:[#allocation5 + $0x2d8] sm:$0xff]
    %v255 = vld [vmem:[#allocation5 + $0x2e0] sm:$0xff]
    %v256 = vld [vmem:[#allocation5 + $0x2e8] sm:$0xff]
    %v257 = vld [vmem:[#allocation5 + $0x2f0] sm:$0xff]
    %v258 = vld [vmem:[#allocation5 + $0x2f8] sm:$0xff]
    %v259 = vld [vmem:[#allocation5 + $0x300] sm:$0xff]
    %v260 = vld [vmem:[#allocation5 + $0x308] sm:$0xff]
    %v261 = vld [vmem:[#allocation5 + $0x310] sm:$0xff]
    %v262 = vld [vmem:[#allocation5 + $0x318] sm:$0xff]
    %v263 = vld [vmem:[#allocation5 + $0x320] sm:$0xff]
    %v264 = vld [vmem:[#allocation5 + $0x328] sm:$0xff]
    %v265 = vld [vmem:[#allocation5 + $0x330] sm:$0xff]
    %v266 = vld [vmem:[#allocation5 + $0x338] sm:$0xff]
    %v267 = vld [vmem:[#allocation5 + $0x340] sm:$0xff]
    %v268 = vld [vmem:[#allocation5 + $0x348] sm:$0xff]
    %v269 = vld [vmem:[#allocation5 + $0x350] sm:$0xff]
    %v270 = vld [vmem:[#allocation5 + $0x358] sm:$0xff]
    %v271 = vld [vmem:[#allocation5 + $0x360] sm:$0xff]
    %v272 = vld [vmem:[#allocation5 + $0x368] sm:$0xff]
    %v273 = vld [vmem:[#allocation5 + $0x370] sm:$0xff]
    %v274 = vld [vmem:[#allocation5 + $0x378] sm:$0xff]
    %v275 = vld [vmem:[#allocation5 + $0x380] sm:$0xff]
    %v276 = vld [vmem:[#allocation5 + $0x388] sm:$0xff]
    %v277 = vld [vmem:[#allocation5 + $0x390] sm:$0xff]
    %v278 = vld [vmem:[#allocation5 + $0x398] sm:$0xff]
    %v279 = vld [vmem:[#allocation5 + $0x3a0] sm:$0xff]
    %v280 = vld [vmem:[#allocation5 + $0x3a8] sm:$0xff]
    %v281 = vld [vmem:[#allocation5 + $0x3b0] sm:$0xff]
    %v282 = vld [vmem:[#allocation5 + $0x3b8] sm:$0xff]
    %v283 = vld [vmem:[#allocation5 + $0x3c0] sm:$0xff]
    %v284 = vld [vmem:[#allocation5 + $0x3c8] sm:$0xff]
    %v285 = vld [vmem:[#allocation5 + $0x3d0] sm:$0xff]
    %v286 = vld [vmem:[#allocation5 + $0x3d8] sm:$0xff]
    %v287 = vld [vmem:[#allocation5 + $0x3e0] sm:$0xff]
    %v288 = vld [vmem:[#allocation5 + $0x3e8] sm:$0xff]
    %v289 = vld [vmem:[#allocation5 + $0x3f0] sm:$0xff]
    %v290 = vld [vmem:[#allocation5 + $0x3f8] sm:$0xff]
    %v291 = vld [vmem:[#allocation5 + $0x400] sm:$0xff]
    %v292 = vld [vmem:[#allocation5 + $0x408] sm:$0xff]
    %v293 = vld [vmem:[#allocation5 + $0x410] sm:$0xff]
    %v294 = vld [vmem:[#allocation5 + $0x418] sm:$0xff]
    %v295 = vld [vmem:[#allocation5 + $0x420] sm:$0xff]
    %v296 = vld [vmem:[#allocation5 + $0x428] sm:$0xff]
    %v297 = vld [vmem:[#allocation5 + $0x430] sm:$0xff]
    %v298 = vld [vmem:[#allocation5 + $0x438] sm:$0xff]
    %v299 = vld [vmem:[#allocation5 + $0x440] sm:$0xff]
    %v300 = vld [vmem:[#allocation5 + $0x448] sm:$0xff]
    %v301 = vld [vmem:[#allocation5 + $0x450] sm:$0xff]
    %v302 = vld [vmem:[#allocation5 + $0x458] sm:$0xff]
    %v303 = vld [vmem:[#allocation5 + $0x460] sm:$0xff]
    %v304 = vld [vmem:[#allocation5 + $0x468] sm:$0xff]
    %v305 = vld [vmem:[#allocation5 + $0x470] sm:$0xff]
    %v306 = vld [vmem:[#allocation5 + $0x478] sm:$0xff]
    %v307 = vld [vmem:[#allocation5 + $0x480] sm:$0xff]
    %v308 = vld [vmem:[#allocation5 + $0x488] sm:$0xff]
    %v309 = vld [vmem:[#allocation5 + $0x490] sm:$0xff]
    %v310 = vld [vmem:[#allocation5 + $0x498] sm:$0xff]
    %v311 = vld [vmem:[#allocation5 + $0x4a0] sm:$0xff]
    %v312 = vld [vmem:[#allocation5 + $0x4a8] sm:$0xff]
    %v313 = vld [vmem:[#allocation5 + $0x4b0] sm:$0xff]
    %v314 = vld [vmem:[#allocation5 + $0x4b8] sm:$0xff]
    %v315 = vld [vmem:[#allocation5 + $0x4c0] sm:$0xff]
    %v316 = vld [vmem:[#allocation5 + $0x4c8] sm:$0xff]
    %v317 = vld [vmem:[#allocation5 + $0x4d0] sm:$0xff]
    %v318 = vld [vmem:[#allocation5 + $0x4d8] sm:$0xff]
    %v319 = vld [vmem:[#allocation5 + $0x4e0] sm:$0xff]
    %v320 = vld [vmem:[#allocation5 + $0x4e8] sm:$0xff]
    %v321 = vld [vmem:[#allocation5 + $0x4f0] sm:$0xff]
    %v322 = vld [vmem:[#allocation5 + $0x4f8] sm:$0xff]
    %v323 = vld [vmem:[#allocation5 + $0x500] sm:$0xff]
    %v324 = vld [vmem:[#allocation5 + $0x508] sm:$0xff]
    %v325 = vld [vmem:[#allocation5 + $0x510] sm:$0xff]
    %v326 = vld [vmem:[#allocation5 + $0x518] sm:$0xff]
    %v327 = vld [vmem:[#allocation5 + $0x520] sm:$0xff]
    %v328 = vld [vmem:[#allocation5 + $0x528] sm:$0xff]
    %v329 = vld [vmem:[#allocation5 + $0x530] sm:$0xff]
    %v330 = vld [vmem:[#allocation5 + $0x538] sm:$0xff]
    %v331 = vld [vmem:[#allocation5 + $0x540] sm:$0xff]
    %v332 = vld [vmem:[#allocation5 + $0x548] sm:$0xff]
    %v333 = vld [vmem:[#allocation5 + $0x550] sm:$0xff]
    %v334 = vld [vmem:[#allocation5 + $0x558] sm:$0xff]
    %v335 = vld [vmem:[#allocation5 + $0x560] sm:$0xff]
    %v336 = vld [vmem:[#allocation5 + $0x568] sm:$0xff]
    %v337 = vld [vmem:[#allocation5 + $0x570] sm:$0xff]
    %v338 = vld [vmem:[#allocation5 + $0x578] sm:$0xff]
    %v339 = vld [vmem:[#allocation5 + $0x580] sm:$0xff]
    %v340 = vld [vmem:[#allocation5 + $0x588] sm:$0xff]
    %v341 = vld [vmem:[#allocation5 + $0x590] sm:$0xff]
    %v342 = vld [vmem:[#allocation5 + $0x598] sm:$0xff]
    %v343 = vld [vmem:[#allocation5 + $0x5a0] sm:$0xff]
    %v344 = vld [vmem:[#allocation5 + $0x5a8] sm:$0xff]
    %v345 = vld [vmem:[#allocation5 + $0x5b0] sm:$0xff]
    %v346 = vld [vmem:[#allocation5 + $0x5b8] sm:$0xff]
    %v347 = vld [vmem:[#allocation5 + $0x5c0] sm:$0xff]
    %v348 = vld [vmem:[#allocation5 + $0x5c8] sm:$0xff]
    %v349 = vld [vmem:[#allocation5 + $0x5d0] sm:$0xff]
    %v350 = vld [vmem:[#allocation5 + $0x5d8] sm:$0xff]
    %v351 = vld [vmem:[#allocation5 + $0x5e0] sm:$0xff]
    %v352 = vld [vmem:[#allocation5 + $0x5e8] sm:$0xff]
    %v353 = vld [vmem:[#allocation5 + $0x5f0] sm:$0xff]
    %v354 = vld [vmem:[#allocation5 + $0x5f8] sm:$0xff]
    %v355 = vld [vmem:[#allocation5 + $0x600] sm:$0xff]
    %v356 = vld [vmem:[#allocation5 + $0x608] sm:$0xff]
    %v357 = vld [vmem:[#allocation5 + $0x610] sm:$0xff]
    %v358 = vld [vmem:[#allocation5 + $0x618] sm:$0xff]
    %v359 = vld [vmem:[#allocation7] sm:$0xf]
    %v361 = vlaneseq
    %v362 = vshrl.u32 %v361, 7
    %v363 = vsub.s32 0, %v362
    %v364 = vrot.slane %v359, %v363
    %v365 = vlaneseq
    %v366 = vshrl.u32 %v365, 7
    %v367 = vsub.s32 1, %v366
    %v368 = vrot.slane %v359, %v367
    %v369 = vlaneseq
    %v370 = vshrl.u32 %v369, 7
    %v371 = vsub.s32 2, %v370
    %v372 = vrot.slane %v359, %v371
    %v373 = vlaneseq
    %v374 = vshrl.u32 %v373, 7
    %v375 = vsub.s32 3, %v374
    %v376 = vrot.slane %v359, %v375
    %v577 = vunpack.c.l.b16 %v163
    %v578 = vunpack.c.h.b16 %v163
    %v579 = vunpack.c.l.b16 %v164
    %v580 = vunpack.c.h.b16 %v164
    %v581 = vunpack.c.l.b16 %v165
    %v582 = vunpack.c.h.b16 %v165
    %v583 = vunpack.c.l.b16 %v166
    %v584 = vunpack.c.h.b16 %v166
    %v585 = vunpack.c.l.b16 %v167
    %v586 = vunpack.c.h.b16 %v167
    %v587 = vunpack.c.l.b16 %v168
    %v588 = vunpack.c.h.b16 %v168
    %v589 = vunpack.c.l.b16 %v169
    %v590 = vunpack.c.h.b16 %v169
    %v591 = vunpack.c.l.b16 %v170
    %v592 = vunpack.c.h.b16 %v170
    %v593 = vunpack.c.l.b16 %v171
    %v594 = vunpack.c.h.b16 %v171
    %v595 = vunpack.c.l.b16 %v172
    %v596 = vunpack.c.h.b16 %v172
    %v597 = vunpack.c.l.b16 %v173
    %v598 = vunpack.c.h.b16 %v173
    %v599 = vunpack.c.l.b16 %v174
    %v600 = vunpack.c.h.b16 %v174
    %v601 = vunpack.c.l.b16 %v175
    %v602 = vunpack.c.h.b16 %v175
    %v603 = vunpack.c.l.b16 %v176
    %v604 = vunpack.c.h.b16 %v176
    %v605 = vunpack.c.l.b16 %v177
    %v606 = vunpack.c.h.b16 %v177
    %v607 = vunpack.c.l.b16 %v178
    %v608 = vunpack.c.h.b16 %v178
    %v609 = vunpack.c.l.b16 %v179
    %v610 = vunpack.c.h.b16 %v179
    %v611 = vunpack.c.l.b16 %v180
    %v612 = vunpack.c.h.b16 %v180
    %v613 = vunpack.c.l.b16 %v181
    %v614 = vunpack.c.h.b16 %v181
    %v615 = vunpack.c.l.b16 %v182
    %v616 = vunpack.c.h.b16 %v182
    %v617 = vunpack.c.l.b16 %v183
    %v618 = vunpack.c.h.b16 %v183
    %v619 = vunpack.c.l.b16 %v184
    %v620 = vunpack.c.h.b16 %v184
    %v621 = vunpack.c.l.b16 %v185
    %v622 = vunpack.c.h.b16 %v185
    %v623 = vunpack.c.l.b16 %v186
    %v624 = vunpack.c.h.b16 %v186
    %v625 = vunpack.c.l.b16 %v187
    %v626 = vunpack.c.h.b16 %v187
    %v627 = vunpack.c.l.b16 %v188
    %v628 = vunpack.c.h.b16 %v188
    %v629 = vunpack.c.l.b16 %v189
    %v630 = vunpack.c.h.b16 %v189
    %v631 = vunpack.c.l.b16 %v190
    %v632 = vunpack.c.h.b16 %v190
    %v633 = vunpack.c.l.b16 %v191
    %v634 = vunpack.c.h.b16 %v191
    %v635 = vunpack.c.l.b16 %v192
    %v636 = vunpack.c.h.b16 %v192
    %v637 = vunpack.c.l.b16 %v193
    %v638 = vunpack.c.h.b16 %v193
    %v639 = vunpack.c.l.b16 %v194
    %v640 = vunpack.c.h.b16 %v194
    %v641 = vunpack.c.l.b16 %v195
    %v642 = vunpack.c.h.b16 %v195
    %v643 = vunpack.c.l.b16 %v196
    %v644 = vunpack.c.h.b16 %v196
    %v645 = vunpack.c.l.b16 %v197
    %v646 = vunpack.c.h.b16 %v197
    %v647 = vunpack.c.l.b16 %v198
    %v648 = vunpack.c.h.b16 %v198
    %v649 = vunpack.c.l.b16 %v199
    %v650 = vunpack.c.h.b16 %v199
    %v651 = vunpack.c.l.b16 %v200
    %v652 = vunpack.c.h.b16 %v200
    %v653 = vunpack.c.l.b16 %v201
    %v654 = vunpack.c.h.b16 %v201
    %v655 = vunpack.c.l.b16 %v202
    %v656 = vunpack.c.h.b16 %v202
    %v657 = vunpack.c.l.b16 %v203
    %v658 = vunpack.c.h.b16 %v203
    %v659 = vunpack.c.l.b16 %v204
    %v660 = vunpack.c.h.b16 %v204
    %v661 = vunpack.c.l.b16 %v205
    %v662 = vunpack.c.h.b16 %v205
    %v663 = vunpack.c.l.b16 %v206
    %v664 = vunpack.c.h.b16 %v206
    %v665 = vunpack.c.l.b16 %v207
    %v666 = vunpack.c.h.b16 %v207
    %v667 = vunpack.c.l.b16 %v208
    %v668 = vunpack.c.h.b16 %v208
    %v669 = vunpack.c.l.b16 %v209
    %v670 = vunpack.c.h.b16 %v209
    %v671 = vunpack.c.l.b16 %v210
    %v672 = vunpack.c.h.b16 %v210
    %v673 = vunpack.c.l.b16 %v211
    %v674 = vunpack.c.h.b16 %v211
    %v675 = vunpack.c.l.b16 %v212
    %v676 = vunpack.c.h.b16 %v212
    %v677 = vunpack.c.l.b16 %v213
    %v678 = vunpack.c.h.b16 %v213
    %v679 = vunpack.c.l.b16 %v214
    %v680 = vunpack.c.h.b16 %v214
    %v681 = vunpack.c.l.b16 %v215
    %v682 = vunpack.c.h.b16 %v215
    %v683 = vunpack.c.l.b16 %v216
    %v684 = vunpack.c.h.b16 %v216
    %v685 = vunpack.c.l.b16 %v217
    %v686 = vunpack.c.h.b16 %v217
    %v687 = vunpack.c.l.b16 %v218
    %v688 = vunpack.c.h.b16 %v218
    %v689 = vunpack.c.l.b16 %v219
    %v690 = vunpack.c.h.b16 %v219
    %v691 = vunpack.c.l.b16 %v220
    %v692 = vunpack.c.h.b16 %v220
    %v693 = vunpack.c.l.b16 %v221
    %v694 = vunpack.c.h.b16 %v221
    %v695 = vunpack.c.l.b16 %v222
    %v696 = vunpack.c.h.b16 %v222
    %v697 = vunpack.c.l.b16 %v223
    %v698 = vunpack.c.h.b16 %v223
    %v699 = vunpack.c.l.b16 %v224
    %v700 = vunpack.c.h.b16 %v224
    %v701 = vunpack.c.l.b16 %v225
    %v702 = vunpack.c.h.b16 %v225
    %v703 = vunpack.c.l.b16 %v226
    %v704 = vunpack.c.h.b16 %v226
    %v705 = vunpack.c.l.b16 %v227
    %v706 = vunpack.c.h.b16 %v227
    %v707 = vunpack.c.l.b16 %v228
    %v708 = vunpack.c.h.b16 %v228
    %v709 = vunpack.c.l.b16 %v229
    %v710 = vunpack.c.h.b16 %v229
    %v711 = vunpack.c.l.b16 %v230
    %v712 = vunpack.c.h.b16 %v230
    %v713 = vunpack.c.l.b16 %v231
    %v714 = vunpack.c.h.b16 %v231
    %v715 = vunpack.c.l.b16 %v232
    %v716 = vunpack.c.h.b16 %v232
    %v717 = vunpack.c.l.b16 %v233
    %v718 = vunpack.c.h.b16 %v233
    %v719 = vunpack.c.l.b16 %v234
    %v720 = vunpack.c.h.b16 %v234
    %v721 = vunpack.c.l.b16 %v235
    %v722 = vunpack.c.h.b16 %v235
    %v723 = vunpack.c.l.b16 %v236
    %v724 = vunpack.c.h.b16 %v236
    %v725 = vunpack.c.l.b16 %v237
    %v726 = vunpack.c.h.b16 %v237
    %v727 = vunpack.c.l.b16 %v238
    %v728 = vunpack.c.h.b16 %v238
    %v729 = vunpack.c.l.b16 %v239
    %v730 = vunpack.c.h.b16 %v239
    %v731 = vunpack.c.l.b16 %v240
    %v732 = vunpack.c.h.b16 %v240
    %v733 = vunpack.c.l.b16 %v241
    %v734 = vunpack.c.h.b16 %v241
    %v735 = vunpack.c.l.b16 %v242
    %v736 = vunpack.c.h.b16 %v242
    %v737 = vunpack.c.l.b16 %v243
    %v738 = vunpack.c.h.b16 %v243
    %v739 = vunpack.c.l.b16 %v244
    %v740 = vunpack.c.h.b16 %v244
    %v741 = vunpack.c.l.b16 %v245
    %v742 = vunpack.c.h.b16 %v245
    %v743 = vunpack.c.l.b16 %v246
    %v744 = vunpack.c.h.b16 %v246
    %v745 = vunpack.c.l.b16 %v247
    %v746 = vunpack.c.h.b16 %v247
    %v747 = vunpack.c.l.b16 %v248
    %v748 = vunpack.c.h.b16 %v248
    %v749 = vunpack.c.l.b16 %v249
    %v750 = vunpack.c.h.b16 %v249
    %v751 = vunpack.c.l.b16 %v250
    %v752 = vunpack.c.h.b16 %v250
    %v753 = vunpack.c.l.b16 %v251
    %v754 = vunpack.c.h.b16 %v251
    %v755 = vunpack.c.l.b16 %v252
    %v756 = vunpack.c.h.b16 %v252
    %v757 = vunpack.c.l.b16 %v253
    %v758 = vunpack.c.h.b16 %v253
    %v759 = vunpack.c.l.b16 %v254
    %v760 = vunpack.c.h.b16 %v254
    %v761 = vunpack.c.l.b16 %v255
    %v762 = vunpack.c.h.b16 %v255
    %v763 = vunpack.c.l.b16 %v256
    %v764 = vunpack.c.h.b16 %v256
    %v765 = vunpack.c.l.b16 %v257
    %v766 = vunpack.c.h.b16 %v257
    %v767 = vunpack.c.l.b16 %v258
    %v768 = vunpack.c.h.b16 %v258
    %v769 = vunpack.c.l.b16 %v259
    %v770 = vunpack.c.h.b16 %v259
    %v771 = vunpack.c.l.b16 %v260
    %v772 = vunpack.c.h.b16 %v260
    %v773 = vunpack.c.l.b16 %v261
    %v774 = vunpack.c.h.b16 %v261
    %v775 = vunpack.c.l.b16 %v262
    %v776 = vunpack.c.h.b16 %v262
    %v777 = vunpack.c.l.b16 %v263
    %v778 = vunpack.c.h.b16 %v263
    %v779 = vunpack.c.l.b16 %v264
    %v780 = vunpack.c.h.b16 %v264
    %v781 = vunpack.c.l.b16 %v265
    %v782 = vunpack.c.h.b16 %v265
    %v783 = vunpack.c.l.b16 %v266
    %v784 = vunpack.c.h.b16 %v266
    %v785 = vunpack.c.l.b16 %v267
    %v786 = vunpack.c.h.b16 %v267
    %v787 = vunpack.c.l.b16 %v268
    %v788 = vunpack.c.h.b16 %v268
    %v789 = vunpack.c.l.b16 %v269
    %v790 = vunpack.c.h.b16 %v269
    %v791 = vunpack.c.l.b16 %v270
    %v792 = vunpack.c.h.b16 %v270
    %v793 = vunpack.c.l.b16 %v271
    %v794 = vunpack.c.h.b16 %v271
    %v795 = vunpack.c.l.b16 %v272
    %v796 = vunpack.c.h.b16 %v272
    %v797 = vunpack.c.l.b16 %v273
    %v798 = vunpack.c.h.b16 %v273
    %v799 = vunpack.c.l.b16 %v274
    %v800 = vunpack.c.h.b16 %v274
    %v801 = vunpack.c.l.b16 %v275
    %v802 = vunpack.c.h.b16 %v275
    %v803 = vunpack.c.l.b16 %v276
    %v804 = vunpack.c.h.b16 %v276
    %v805 = vunpack.c.l.b16 %v277
    %v806 = vunpack.c.h.b16 %v277
    %v807 = vunpack.c.l.b16 %v278
    %v808 = vunpack.c.h.b16 %v278
    %v809 = vunpack.c.l.b16 %v279
    %v810 = vunpack.c.h.b16 %v279
    %v811 = vunpack.c.l.b16 %v280
    %v812 = vunpack.c.h.b16 %v280
    %v813 = vunpack.c.l.b16 %v281
    %v814 = vunpack.c.h.b16 %v281
    %v815 = vunpack.c.l.b16 %v282
    %v816 = vunpack.c.h.b16 %v282
    %v817 = vunpack.c.l.b16 %v283
    %v818 = vunpack.c.h.b16 %v283
    %v819 = vunpack.c.l.b16 %v284
    %v820 = vunpack.c.h.b16 %v284
    %v821 = vunpack.c.l.b16 %v285
    %v822 = vunpack.c.h.b16 %v285
    %v823 = vunpack.c.l.b16 %v286
    %v824 = vunpack.c.h.b16 %v286
    %v825 = vunpack.c.l.b16 %v287
    %v826 = vunpack.c.h.b16 %v287
    %v827 = vunpack.c.l.b16 %v288
    %v828 = vunpack.c.h.b16 %v288
    %v829 = vunpack.c.l.b16 %v289
    %v830 = vunpack.c.h.b16 %v289
    %v831 = vunpack.c.l.b16 %v290
    %v832 = vunpack.c.h.b16 %v290
    %v833 = vunpack.c.l.b16 %v291
    %v834 = vunpack.c.h.b16 %v291
    %v835 = vunpack.c.l.b16 %v292
    %v836 = vunpack.c.h.b16 %v292
    %v837 = vunpack.c.l.b16 %v293
    %v838 = vunpack.c.h.b16 %v293
    %v839 = vunpack.c.l.b16 %v294
    %v840 = vunpack.c.h.b16 %v294
    %v841 = vunpack.c.l.b16 %v295
    %v842 = vunpack.c.h.b16 %v295
    %v843 = vunpack.c.l.b16 %v296
    %v844 = vunpack.c.h.b16 %v296
    %v845 = vunpack.c.l.b16 %v297
    %v846 = vunpack.c.h.b16 %v297
    %v847 = vunpack.c.l.b16 %v298
    %v848 = vunpack.c.h.b16 %v298
    %v849 = vunpack.c.l.b16 %v299
    %v850 = vunpack.c.h.b16 %v299
    %v851 = vunpack.c.l.b16 %v300
    %v852 = vunpack.c.h.b16 %v300
    %v853 = vunpack.c.l.b16 %v301
    %v854 = vunpack.c.h.b16 %v301
    %v855 = vunpack.c.l.b16 %v302
    %v856 = vunpack.c.h.b16 %v302
    %v857 = vunpack.c.l.b16 %v303
    %v858 = vunpack.c.h.b16 %v303
    %v859 = vunpack.c.l.b16 %v304
    %v860 = vunpack.c.h.b16 %v304
    %v861 = vunpack.c.l.b16 %v305
    %v862 = vunpack.c.h.b16 %v305
    %v863 = vunpack.c.l.b16 %v306
    %v864 = vunpack.c.h.b16 %v306
    %v865 = vunpack.c.l.b16 %v307
    %v866 = vunpack.c.h.b16 %v307
    %v867 = vunpack.c.l.b16 %v308
    %v868 = vunpack.c.h.b16 %v308
    %v869 = vunpack.c.l.b16 %v309
    %v870 = vunpack.c.h.b16 %v309
    %v871 = vunpack.c.l.b16 %v310
    %v872 = vunpack.c.h.b16 %v310
    %v873 = vunpack.c.l.b16 %v311
    %v874 = vunpack.c.h.b16 %v311
    %v875 = vunpack.c.l.b16 %v312
    %v876 = vunpack.c.h.b16 %v312
    %v877 = vunpack.c.l.b16 %v313
    %v878 = vunpack.c.h.b16 %v313
    %v879 = vunpack.c.l.b16 %v314
    %v880 = vunpack.c.h.b16 %v314
    %v881 = vunpack.c.l.b16 %v315
    %v882 = vunpack.c.h.b16 %v315
    %v883 = vunpack.c.l.b16 %v316
    %v884 = vunpack.c.h.b16 %v316
    %v885 = vunpack.c.l.b16 %v317
    %v886 = vunpack.c.h.b16 %v317
    %v887 = vunpack.c.l.b16 %v318
    %v888 = vunpack.c.h.b16 %v318
    %v889 = vunpack.c.l.b16 %v319
    %v890 = vunpack.c.h.b16 %v319
    %v891 = vunpack.c.l.b16 %v320
    %v892 = vunpack.c.h.b16 %v320
    %v893 = vunpack.c.l.b16 %v321
    %v894 = vunpack.c.h.b16 %v321
    %v895 = vunpack.c.l.b16 %v322
    %v896 = vunpack.c.h.b16 %v322
    %v897 = vunpack.c.l.b16 %v323
    %v898 = vunpack.c.h.b16 %v323
    %v899 = vunpack.c.l.b16 %v324
    %v900 = vunpack.c.h.b16 %v324
    %v901 = vunpack.c.l.b16 %v325
    %v902 = vunpack.c.h.b16 %v325
    %v903 = vunpack.c.l.b16 %v326
    %v904 = vunpack.c.h.b16 %v326
    %v905 = vunpack.c.l.b16 %v327
    %v906 = vunpack.c.h.b16 %v327
    %v907 = vunpack.c.l.b16 %v328
    %v908 = vunpack.c.h.b16 %v328
    %v909 = vunpack.c.l.b16 %v329
    %v910 = vunpack.c.h.b16 %v329
    %v911 = vunpack.c.l.b16 %v330
    %v912 = vunpack.c.h.b16 %v330
    %v913 = vunpack.c.l.b16 %v331
    %v914 = vunpack.c.h.b16 %v331
    %v915 = vunpack.c.l.b16 %v332
    %v916 = vunpack.c.h.b16 %v332
    %v917 = vunpack.c.l.b16 %v333
    %v918 = vunpack.c.h.b16 %v333
    %v919 = vunpack.c.l.b16 %v334
    %v920 = vunpack.c.h.b16 %v334
    %v921 = vunpack.c.l.b16 %v335
    %v922 = vunpack.c.h.b16 %v335
    %v923 = vunpack.c.l.b16 %v336
    %v924 = vunpack.c.h.b16 %v336
    %v925 = vunpack.c.l.b16 %v337
    %v926 = vunpack.c.h.b16 %v337
    %v927 = vunpack.c.l.b16 %v338
    %v928 = vunpack.c.h.b16 %v338
    %v929 = vunpack.c.l.b16 %v339
    %v930 = vunpack.c.h.b16 %v339
    %v931 = vunpack.c.l.b16 %v340
    %v932 = vunpack.c.h.b16 %v340
    %v933 = vunpack.c.l.b16 %v341
    %v934 = vunpack.c.h.b16 %v341
    %v935 = vunpack.c.l.b16 %v342
    %v936 = vunpack.c.h.b16 %v342
    %v937 = vunpack.c.l.b16 %v343
    %v938 = vunpack.c.h.b16 %v343
    %v939 = vunpack.c.l.b16 %v344
    %v940 = vunpack.c.h.b16 %v344
    %v941 = vunpack.c.l.b16 %v345
    %v942 = vunpack.c.h.b16 %v345
    %v943 = vunpack.c.l.b16 %v346
    %v944 = vunpack.c.h.b16 %v346
    %v945 = vunpack.c.l.b16 %v347
    %v946 = vunpack.c.h.b16 %v347
    %v947 = vunpack.c.l.b16 %v348
    %v948 = vunpack.c.h.b16 %v348
    %v949 = vunpack.c.l.b16 %v349
    %v950 = vunpack.c.h.b16 %v349
    %v951 = vunpack.c.l.b16 %v350
    %v952 = vunpack.c.h.b16 %v350
    %v953 = vunpack.c.l.b16 %v351
    %v954 = vunpack.c.h.b16 %v351
    %v955 = vunpack.c.l.b16 %v352
    %v956 = vunpack.c.h.b16 %v352
    %v957 = vunpack.c.l.b16 %v353
    %v958 = vunpack.c.h.b16 %v353
    %v959 = vunpack.c.l.b16 %v354
    %v960 = vunpack.c.h.b16 %v354
    %v961 = vunpack.c.l.b16 %v355
    %v962 = vunpack.c.h.b16 %v355
    %v963 = vunpack.c.l.b16 %v356
    %v964 = vunpack.c.h.b16 %v356
    %v965 = vunpack.c.l.b16 %v357
    %v966 = vunpack.c.h.b16 %v357
    %v967 = vunpack.c.l.b16 %v358
    %v968 = vunpack.c.h.b16 %v358
    %v969 = vpack.c.b16 %v581, %v577
    %v970 = vpack.c.b16 %v582, %v578
    %v971 = vpack.c.b16 %v583, %v579
    %v972 = vpack.c.b16 %v584, %v580
    %v973 = vpack.c.b16 %v589, %v585
    %v974 = vpack.c.b16 %v590, %v586
    %v975 = vpack.c.b16 %v591, %v587
    %v976 = vpack.c.b16 %v592, %v588
    %v977 = vpack.c.b16 %v597, %v593
    %v978 = vpack.c.b16 %v598, %v594
    %v979 = vpack.c.b16 %v599, %v595
    %v980 = vpack.c.b16 %v600, %v596
    %v981 = vpack.c.b16 %v605, %v601
    %v982 = vpack.c.b16 %v606, %v602
    %v983 = vpack.c.b16 %v607, %v603
    %v984 = vpack.c.b16 %v608, %v604
    %v985 = vpack.c.b16 %v613, %v609
    %v986 = vpack.c.b16 %v614, %v610
    %v987 = vpack.c.b16 %v615, %v611
    %v988 = vpack.c.b16 %v616, %v612
    %v989 = vpack.c.b16 %v621, %v617
    %v990 = vpack.c.b16 %v622, %v618
    %v991 = vpack.c.b16 %v623, %v619
    %v992 = vpack.c.b16 %v624, %v620
    %v993 = vpack.c.b16 %v629, %v625
    %v994 = vpack.c.b16 %v630, %v626
    %v995 = vpack.c.b16 %v631, %v627
    %v996 = vpack.c.b16 %v632, %v628
    %v997 = vpack.c.b16 %v637, %v633
    %v998 = vpack.c.b16 %v638, %v634
    %v999 = vpack.c.b16 %v639, %v635
    %v1000 = vpack.c.b16 %v640, %v636
    %v1001 = vpack.c.b16 %v645, %v641
    %v1002 = vpack.c.b16 %v646, %v642
    %v1003 = vpack.c.b16 %v647, %v643
    %v1004 = vpack.c.b16 %v648, %v644
    %v1005 = vpack.c.b16 %v653, %v649
    %v1006 = vpack.c.b16 %v654, %v650
    %v1007 = vpack.c.b16 %v655, %v651
    %v1008 = vpack.c.b16 %v656, %v652
    %v1009 = vpack.c.b16 %v661, %v657
    %v1010 = vpack.c.b16 %v662, %v658
    %v1011 = vpack.c.b16 %v663, %v659
    %v1012 = vpack.c.b16 %v664, %v660
    %v1013 = vpack.c.b16 %v669, %v665
    %v1014 = vpack.c.b16 %v670, %v666
    %v1015 = vpack.c.b16 %v671, %v667
    %v1016 = vpack.c.b16 %v672, %v668
    %v1017 = vpack.c.b16 %v677, %v673
    %v1018 = vpack.c.b16 %v678, %v674
    %v1019 = vpack.c.b16 %v679, %v675
    %v1020 = vpack.c.b16 %v680, %v676
    %v1021 = vpack.c.b16 %v685, %v681
    %v1022 = vpack.c.b16 %v686, %v682
    %v1023 = vpack.c.b16 %v687, %v683
    %v1024 = vpack.c.b16 %v688, %v684
    %v1025 = vpack.c.b16 %v693, %v689
    %v1026 = vpack.c.b16 %v694, %v690
    %v1027 = vpack.c.b16 %v695, %v691
    %v1028 = vpack.c.b16 %v696, %v692
    %v1029 = vpack.c.b16 %v701, %v697
    %v1030 = vpack.c.b16 %v702, %v698
    %v1031 = vpack.c.b16 %v703, %v699
    %v1032 = vpack.c.b16 %v704, %v700
    %v1033 = vpack.c.b16 %v709, %v705
    %v1034 = vpack.c.b16 %v710, %v706
    %v1035 = vpack.c.b16 %v711, %v707
    %v1036 = vpack.c.b16 %v712, %v708
    %v1037 = vpack.c.b16 %v717, %v713
    %v1038 = vpack.c.b16 %v718, %v714
    %v1039 = vpack.c.b16 %v719, %v715
    %v1040 = vpack.c.b16 %v720, %v716
    %v1041 = vpack.c.b16 %v725, %v721
    %v1042 = vpack.c.b16 %v726, %v722
    %v1043 = vpack.c.b16 %v727, %v723
    %v1044 = vpack.c.b16 %v728, %v724
    %v1045 = vpack.c.b16 %v733, %v729
    %v1046 = vpack.c.b16 %v734, %v730
    %v1047 = vpack.c.b16 %v735, %v731
    %v1048 = vpack.c.b16 %v736, %v732
    %v1049 = vpack.c.b16 %v741, %v737
    %v1050 = vpack.c.b16 %v742, %v738
    %v1051 = vpack.c.b16 %v743, %v739
    %v1052 = vpack.c.b16 %v744, %v740
    %v1053 = vpack.c.b16 %v749, %v745
    %v1054 = vpack.c.b16 %v750, %v746
    %v1055 = vpack.c.b16 %v751, %v747
    %v1056 = vpack.c.b16 %v752, %v748
    %v1057 = vpack.c.b16 %v757, %v753
    %v1058 = vpack.c.b16 %v758, %v754
    %v1059 = vpack.c.b16 %v759, %v755
    %v1060 = vpack.c.b16 %v760, %v756
    %v1061 = vpack.c.b16 %v765, %v761
    %v1062 = vpack.c.b16 %v766, %v762
    %v1063 = vpack.c.b16 %v767, %v763
    %v1064 = vpack.c.b16 %v768, %v764
    %v1065 = vpack.c.b16 %v773, %v769
    %v1066 = vpack.c.b16 %v774, %v770
    %v1067 = vpack.c.b16 %v775, %v771
    %v1068 = vpack.c.b16 %v776, %v772
    %v1069 = vpack.c.b16 %v781, %v777
    %v1070 = vpack.c.b16 %v782, %v778
    %v1071 = vpack.c.b16 %v783, %v779
    %v1072 = vpack.c.b16 %v784, %v780
    %v1073 = vpack.c.b16 %v789, %v785
    %v1074 = vpack.c.b16 %v790, %v786
    %v1075 = vpack.c.b16 %v791, %v787
    %v1076 = vpack.c.b16 %v792, %v788
    %v1077 = vpack.c.b16 %v797, %v793
    %v1078 = vpack.c.b16 %v798, %v794
    %v1079 = vpack.c.b16 %v799, %v795
    %v1080 = vpack.c.b16 %v800, %v796
    %v1081 = vpack.c.b16 %v805, %v801
    %v1082 = vpack.c.b16 %v806, %v802
    %v1083 = vpack.c.b16 %v807, %v803
    %v1084 = vpack.c.b16 %v808, %v804
    %v1085 = vpack.c.b16 %v813, %v809
    %v1086 = vpack.c.b16 %v814, %v810
    %v1087 = vpack.c.b16 %v815, %v811
    %v1088 = vpack.c.b16 %v816, %v812
    %v1089 = vpack.c.b16 %v821, %v817
    %v1090 = vpack.c.b16 %v822, %v818
    %v1091 = vpack.c.b16 %v823, %v819
    %v1092 = vpack.c.b16 %v824, %v820
    %v1093 = vpack.c.b16 %v829, %v825
    %v1094 = vpack.c.b16 %v830, %v826
    %v1095 = vpack.c.b16 %v831, %v827
    %v1096 = vpack.c.b16 %v832, %v828
    %v1097 = vpack.c.b16 %v837, %v833
    %v1098 = vpack.c.b16 %v838, %v834
    %v1099 = vpack.c.b16 %v839, %v835
    %v1100 = vpack.c.b16 %v840, %v836
    %v1101 = vpack.c.b16 %v845, %v841
    %v1102 = vpack.c.b16 %v846, %v842
    %v1103 = vpack.c.b16 %v847, %v843
    %v1104 = vpack.c.b16 %v848, %v844
    %v1105 = vpack.c.b16 %v853, %v849
    %v1106 = vpack.c.b16 %v854, %v850
    %v1107 = vpack.c.b16 %v855, %v851
    %v1108 = vpack.c.b16 %v856, %v852
    %v1109 = vpack.c.b16 %v861, %v857
    %v1110 = vpack.c.b16 %v862, %v858
    %v1111 = vpack.c.b16 %v863, %v859
    %v1112 = vpack.c.b16 %v864, %v860
    %v1113 = vpack.c.b16 %v869, %v865
    %v1114 = vpack.c.b16 %v870, %v866
    %v1115 = vpack.c.b16 %v871, %v867
    %v1116 = vpack.c.b16 %v872, %v868
    %v1117 = vpack.c.b16 %v877, %v873
    %v1118 = vpack.c.b16 %v878, %v874
    %v1119 = vpack.c.b16 %v879, %v875
    %v1120 = vpack.c.b16 %v880, %v876
    %v1121 = vpack.c.b16 %v885, %v881
    %v1122 = vpack.c.b16 %v886, %v882
    %v1123 = vpack.c.b16 %v887, %v883
    %v1124 = vpack.c.b16 %v888, %v884
    %v1125 = vpack.c.b16 %v893, %v889
    %v1126 = vpack.c.b16 %v894, %v890
    %v1127 = vpack.c.b16 %v895, %v891
    %v1128 = vpack.c.b16 %v896, %v892
    %v1129 = vpack.c.b16 %v901, %v897
    %v1130 = vpack.c.b16 %v902, %v898
    %v1131 = vpack.c.b16 %v903, %v899
    %v1132 = vpack.c.b16 %v904, %v900
    %v1133 = vpack.c.b16 %v909, %v905
    %v1134 = vpack.c.b16 %v910, %v906
    %v1135 = vpack.c.b16 %v911, %v907
    %v1136 = vpack.c.b16 %v912, %v908
    %v1137 = vpack.c.b16 %v917, %v913
    %v1138 = vpack.c.b16 %v918, %v914
    %v1139 = vpack.c.b16 %v919, %v915
    %v1140 = vpack.c.b16 %v920, %v916
    %v1141 = vpack.c.b16 %v925, %v921
    %v1142 = vpack.c.b16 %v926, %v922
    %v1143 = vpack.c.b16 %v927, %v923
    %v1144 = vpack.c.b16 %v928, %v924
    %v1145 = vpack.c.b16 %v933, %v929
    %v1146 = vpack.c.b16 %v934, %v930
    %v1147 = vpack.c.b16 %v935, %v931
    %v1148 = vpack.c.b16 %v936, %v932
    %v1149 = vpack.c.b16 %v941, %v937
    %v1150 = vpack.c.b16 %v942, %v938
    %v1151 = vpack.c.b16 %v943, %v939
    %v1152 = vpack.c.b16 %v944, %v940
    %v1153 = vpack.c.b16 %v949, %v945
    %v1154 = vpack.c.b16 %v950, %v946
    %v1155 = vpack.c.b16 %v951, %v947
    %v1156 = vpack.c.b16 %v952, %v948
    %v1157 = vpack.c.b16 %v957, %v953
    %v1158 = vpack.c.b16 %v958, %v954
    %v1159 = vpack.c.b16 %v959, %v955
    %v1160 = vpack.c.b16 %v960, %v956
    %v1161 = vpack.c.b16 %v965, %v961
    %v1162 = vpack.c.b16 %v966, %v962
    %v1163 = vpack.c.b16 %v967, %v963
    %v1164 = vpack.c.b16 %v968, %v964
    %vm1361 = vcmask 130048
    %v1363 = vsel %vm1361, %v162, 0
    %1365 = vmatprep.subr.bf16.mxu0 %v998
    %1366 = vmatpush1.bf16.msra.mxu0 %v997
    %1367 = vmatprep.subr.bf16.mxu0 %v994
    %1368 = vmatpush1.bf16.msra.mxu0 %v993
    %1369 = vmatprep.subr.bf16.mxu0 %v990
    %1370 = vmatpush1.bf16.msra.mxu0 %v989
    %1371 = vmatprep.subr.bf16.mxu0 %v986
    %1372 = vmatpush1.bf16.msra.mxu0 %v985
    %1373 = vmatprep.subr.bf16.mxu0 %v982
    %1374 = vmatpush1.bf16.msra.mxu0 %v981
    %1375 = vmatprep.subr.bf16.mxu0 %v978
    %1376 = vmatpush1.bf16.msra.mxu0 %v977
    %1377 = vmatprep.subr.bf16.mxu0 %v974
    %1378 = vmatpush1.bf16.msra.mxu0 %v973
    %1379 = vmatprep.subr.bf16.mxu0 %v970
    %1380 = vmatpush1.bf16.msra.mxu0 %v969
    %1381 = vmatprep.subr.bf16.mxu0 %v1030
    %1382 = vmatpush2.bf16.msra.mxu0 %v1029
    %1383 = vmatprep.subr.bf16.mxu0 %v1026
    %1384 = vmatpush2.bf16.msra.mxu0 %v1025
    %1385 = vmatprep.subr.bf16.mxu0 %v1022
    %1386 = vmatpush2.bf16.msra.mxu0 %v1021
    %1387 = vmatprep.subr.bf16.mxu0 %v1018
    %1388 = vmatpush2.bf16.msra.mxu0 %v1017
    %1389 = vmatprep.subr.bf16.mxu0 %v1014
    %1390 = vmatpush2.bf16.msra.mxu0 %v1013
    %1391 = vmatprep.subr.bf16.mxu0 %v1010
    %1392 = vmatpush2.bf16.msra.mxu0 %v1009
    %1393 = vmatprep.subr.bf16.mxu0 %v1006
    %1394 = vmatpush2.bf16.msra.mxu0 %v1005
    %1395 = vmatprep.subr.bf16.mxu0 %v1002
    %1396 = vmatpush2.bf16.msra.mxu0 %v1001
    %1397 = vmatprep.mubr.bf16.mxu0 %v157
    %1398 = vmatmul.mubr.bf16.gmra.mxu0 %v156
    %v1399 = vpop.f32.mrf.mxu0
    %v1400 = vadd.f32 %v364, %v1399
    %v1401 = vpop.f32.mrf.mxu0
    %v1402 = vadd.f32 %v368, %v1401
    %v1403 = vpop.f32.mrf.mxu0
    %v1404 = vpop.f32.mrf.mxu0
    %1405 = vdwg.mxu0
    %1406 = vmatprep.subr.bf16.mxu0 %v1062
    %1407 = vmatpush1.bf16.msra.mxu0 %v1061
    %1408 = vmatprep.subr.bf16.mxu0 %v1058
    %1409 = vmatpush1.bf16.msra.mxu0 %v1057
    %1410 = vmatprep.subr.bf16.mxu0 %v1054
    %1411 = vmatpush1.bf16.msra.mxu0 %v1053
    %1412 = vmatprep.subr.bf16.mxu0 %v1050
    %1413 = vmatpush1.bf16.msra.mxu0 %v1049
    %1414 = vmatprep.subr.bf16.mxu0 %v1046
    %1415 = vmatpush1.bf16.msra.mxu0 %v1045
    %1416 = vmatprep.subr.bf16.mxu0 %v1042
    %1417 = vmatpush1.bf16.msra.mxu0 %v1041
    %1418 = vmatprep.subr.bf16.mxu0 %v1038
    %1419 = vmatpush1.bf16.msra.mxu0 %v1037
    %1420 = vmatprep.subr.bf16.mxu0 %v1034
    %1421 = vmatpush1.bf16.msra.mxu0 %v1033
    %1422 = vmatprep.subr.bf16.mxu0 %v1094
    %1423 = vmatpush2.bf16.msra.mxu0 %v1093
    %1424 = vmatprep.subr.bf16.mxu0 %v1090
    %1425 = vmatpush2.bf16.msra.mxu0 %v1089
    %1426 = vmatprep.subr.bf16.mxu0 %v1086
    %1427 = vmatpush2.bf16.msra.mxu0 %v1085
    %1428 = vmatprep.subr.bf16.mxu0 %v1082
    %1429 = vmatpush2.bf16.msra.mxu0 %v1081
    %1430 = vmatprep.subr.bf16.mxu0 %v1078
    %1431 = vmatpush2.bf16.msra.mxu0 %v1077
    %1432 = vmatprep.subr.bf16.mxu0 %v1074
    %1433 = vmatpush2.bf16.msra.mxu0 %v1073
    %1434 = vmatprep.subr.bf16.mxu0 %v1070
    %1435 = vmatpush2.bf16.msra.mxu0 %v1069
    %1436 = vmatprep.subr.bf16.mxu0 %v1066
    %1437 = vmatpush2.bf16.msra.mxu0 %v1065
    %1438 = vmatprep.mubr.bf16.mxu0 %v159
    %1439 = vmatmul.mubr.bf16.gmra.mxu0 %v158
    %v1440 = vpop.f32.mrf.mxu0
    %v1441 = vadd.f32 %v1400, %v1440
    %v1442 = vpop.f32.mrf.mxu0
    %v1443 = vadd.f32 %v1402, %v1442
    %v1444 = vpop.f32.mrf.mxu0
    %v1445 = vpop.f32.mrf.mxu0
    %1446 = vdwg.mxu0
    %1447 = vmatprep.subr.bf16.mxu0 %v1126
    %1448 = vmatpush1.bf16.msra.mxu0 %v1125
    %1449 = vmatprep.subr.bf16.mxu0 %v1122
    %1450 = vmatpush1.bf16.msra.mxu0 %v1121
    %1451 = vmatprep.subr.bf16.mxu0 %v1118
    %1452 = vmatpush1.bf16.msra.mxu0 %v1117
    %1453 = vmatprep.subr.bf16.mxu0 %v1114
    %1454 = vmatpush1.bf16.msra.mxu0 %v1113
    %1455 = vmatprep.subr.bf16.mxu0 %v1110
    %1456 = vmatpush1.bf16.msra.mxu0 %v1109
    %1457 = vmatprep.subr.bf16.mxu0 %v1106
    %1458 = vmatpush1.bf16.msra.mxu0 %v1105
    %1459 = vmatprep.subr.bf16.mxu0 %v1102
    %1460 = vmatpush1.bf16.msra.mxu0 %v1101
    %1461 = vmatprep.subr.bf16.mxu0 %v1098
    %1462 = vmatpush1.bf16.msra.mxu0 %v1097
    %1463 = vmatprep.subr.bf16.mxu0 %v1158
    %1464 = vmatpush2.bf16.msra.mxu0 %v1157
    %1465 = vmatprep.subr.bf16.mxu0 %v1154
    %1466 = vmatpush2.bf16.msra.mxu0 %v1153
    %1467 = vmatprep.subr.bf16.mxu0 %v1150
    %1468 = vmatpush2.bf16.msra.mxu0 %v1149
    %1469 = vmatprep.subr.bf16.mxu0 %v1146
    %1470 = vmatpush2.bf16.msra.mxu0 %v1145
    %1471 = vmatprep.subr.bf16.mxu0 %v1142
    %1472 = vmatpush2.bf16.msra.mxu0 %v1141
    %1473 = vmatprep.subr.bf16.mxu0 %v1138
    %1474 = vmatpush2.bf16.msra.mxu0 %v1137
    %1475 = vmatprep.subr.bf16.mxu0 %v1134
    %1476 = vmatpush2.bf16.msra.mxu0 %v1133
    %1477 = vmatprep.subr.bf16.mxu0 %v1130
    %1478 = vmatpush2.bf16.msra.mxu0 %v1129
    %1479 = vmatprep.mubr.bf16.mxu0 %v161
    %1480 = vmatmul.mubr.bf16.gmra.mxu0 %v160
    %v1481 = vpop.f32.mrf.mxu0
    %v1482 = vadd.f32 %v1441, %v1481
    %v1483 = vpop.f32.mrf.mxu0
    %v1484 = vadd.f32 %v1443, %v1483
    %v1485 = vpop.f32.mrf.mxu0
    %v1486 = vpop.f32.mrf.mxu0
    %1487 = vdwg.mxu0
    %1488 = vmatprep.subr.bf16.mxu0 0
    %1489 = vmatpush1.bf16.msra.mxu0 0
    %1490 = vmatprep.subr.bf16.mxu0 0
    %1491 = vmatpush1.bf16.msra.mxu0 0
    %1492 = vmatprep.subr.bf16.mxu0 0
    %1493 = vmatpush1.bf16.msra.mxu0 0
    %1494 = vmatprep.subr.bf16.mxu0 0
    %1495 = vmatpush1.bf16.msra.mxu0 0
    %1496 = vmatprep.subr.bf16.mxu0 0
    %1497 = vmatpush1.bf16.msra.mxu0 0
    %1498 = vmatprep.subr.bf16.mxu0 0
    %1499 = vmatpush1.bf16.msra.mxu0 0
    %1500 = vmatprep.subr.bf16.mxu0 0
    %1501 = vmatpush1.bf16.msra.mxu0 0
    %1502 = vmatprep.subr.bf16.mxu0 %v1162
    %1503 = vmatpush1.bf16.msra.mxu0 %v1161
    %1504 = vmatprep.subr.bf16.mxu0 0
    %1505 = vmatpush2.bf16.msra.mxu0 0
    %1506 = vmatprep.subr.bf16.mxu0 0
    %1507 = vmatpush2.bf16.msra.mxu0 0
    %1508 = vmatprep.subr.bf16.mxu0 0
    %1509 = vmatpush2.bf16.msra.mxu0 0
    %1510 = vmatprep.subr.bf16.mxu0 0
    %1511 = vmatpush2.bf16.msra.mxu0 0
    %1512 = vmatprep.subr.bf16.mxu0 0
    %1513 = vmatpush2.bf16.msra.mxu0 0
    %1514 = vmatprep.subr.bf16.mxu0 0
    %1515 = vmatpush2.bf16.msra.mxu0 0
    %1516 = vmatprep.subr.bf16.mxu0 0
    %1517 = vmatpush2.bf16.msra.mxu0 0
    %1518 = vmatprep.subr.bf16.mxu0 0
    %1519 = vmatpush2.bf16.msra.mxu0 0
    %1520 = vmatprep.mubr.bf16.mxu0 0
    %1521 = vmatmul.mubr.bf16.gmra.mxu0 %v1363
    %v1522 = vpop.f32.mrf.mxu0
    %v1523 = vadd.f32 %v1482, %v1522
    %v1524 = vpop.f32.mrf.mxu0
    %v1525 = vadd.f32 %v1484, %v1524
    %v1526 = vpop.f32.mrf.mxu0
    %v1527 = vpop.f32.mrf.mxu0
    %1528 = vdwg.mxu0
    %1529 = vmatprep.subr.bf16.mxu0 %v1000
    %1530 = vmatpush1.bf16.msra.mxu0 %v999
    %1531 = vmatprep.subr.bf16.mxu0 %v996
    %1532 = vmatpush1.bf16.msra.mxu0 %v995
    %1533 = vmatprep.subr.bf16.mxu0 %v992
    %1534 = vmatpush1.bf16.msra.mxu0 %v991
    %1535 = vmatprep.subr.bf16.mxu0 %v988
    %1536 = vmatpush1.bf16.msra.mxu0 %v987
    %1537 = vmatprep.subr.bf16.mxu0 %v984
    %1538 = vmatpush1.bf16.msra.mxu0 %v983
    %1539 = vmatprep.subr.bf16.mxu0 %v980
    %1540 = vmatpush1.bf16.msra.mxu0 %v979
    %1541 = vmatprep.subr.bf16.mxu0 %v976
    %1542 = vmatpush1.bf16.msra.mxu0 %v975
    %1543 = vmatprep.subr.bf16.mxu0 %v972
    %1544 = vmatpush1.bf16.msra.mxu0 %v971
    %1545 = vmatprep.subr.bf16.mxu0 %v1032
    %1546 = vmatpush2.bf16.msra.mxu0 %v1031
    %1547 = vmatprep.subr.bf16.mxu0 %v1028
    %1548 = vmatpush2.bf16.msra.mxu0 %v1027
    %1549 = vmatprep.subr.bf16.mxu0 %v1024
    %1550 = vmatpush2.bf16.msra.mxu0 %v1023
    %1551 = vmatprep.subr.bf16.mxu0 %v1020
    %1552 = vmatpush2.bf16.msra.mxu0 %v1019
    %1553 = vmatprep.subr.bf16.mxu0 %v1016
    %1554 = vmatpush2.bf16.msra.mxu0 %v1015
    %1555 = vmatprep.subr.bf16.mxu0 %v1012
    %1556 = vmatpush2.bf16.msra.mxu0 %v1011
    %1557 = vmatprep.subr.bf16.mxu0 %v1008
    %1558 = vmatpush2.bf16.msra.mxu0 %v1007
    %1559 = vmatprep.subr.bf16.mxu0 %v1004
    %1560 = vmatpush2.bf16.msra.mxu0 %v1003
    %1561 = vmatprep.mubr.bf16.mxu0 %v157
    %1562 = vmatmul.mubr.bf16.gmra.mxu0 %v156
    %v1563 = vpop.f32.mrf.mxu0
    %v1564 = vadd.f32 %v372, %v1563
    %v1565 = vpop.f32.mrf.mxu0
    %v1566 = vadd.f32 %v376, %v1565
    %v1567 = vpop.f32.mrf.mxu0
    %v1568 = vpop.f32.mrf.mxu0
    %1569 = vdwg.mxu0
    %1570 = vmatprep.subr.bf16.mxu0 %v1064
    %1571 = vmatpush1.bf16.msra.mxu0 %v1063
    %1572 = vmatprep.subr.bf16.mxu0 %v1060
    %1573 = vmatpush1.bf16.msra.mxu0 %v1059
    %1574 = vmatprep.subr.bf16.mxu0 %v1056
    %1575 = vmatpush1.bf16.msra.mxu0 %v1055
    %1576 = vmatprep.subr.bf16.mxu0 %v1052
    %1577 = vmatpush1.bf16.msra.mxu0 %v1051
    %1578 = vmatprep.subr.bf16.mxu0 %v1048
    %1579 = vmatpush1.bf16.msra.mxu0 %v1047
    %1580 = vmatprep.subr.bf16.mxu0 %v1044
    %1581 = vmatpush1.bf16.msra.mxu0 %v1043
    %1582 = vmatprep.subr.bf16.mxu0 %v1040
    %1583 = vmatpush1.bf16.msra.mxu0 %v1039
    %1584 = vmatprep.subr.bf16.mxu0 %v1036
    %1585 = vmatpush1.bf16.msra.mxu0 %v1035
    %1586 = vmatprep.subr.bf16.mxu0 %v1096
    %1587 = vmatpush2.bf16.msra.mxu0 %v1095
    %1588 = vmatprep.subr.bf16.mxu0 %v1092
    %1589 = vmatpush2.bf16.msra.mxu0 %v1091
    %1590 = vmatprep.subr.bf16.mxu0 %v1088
    %1591 = vmatpush2.bf16.msra.mxu0 %v1087
    %1592 = vmatprep.subr.bf16.mxu0 %v1084
    %1593 = vmatpush2.bf16.msra.mxu0 %v1083
    %1594 = vmatprep.subr.bf16.mxu0 %v1080
    %1595 = vmatpush2.bf16.msra.mxu0 %v1079
    %1596 = vmatprep.subr.bf16.mxu0 %v1076
    %1597 = vmatpush2.bf16.msra.mxu0 %v1075
    %1598 = vmatprep.subr.bf16.mxu0 %v1072
    %1599 = vmatpush2.bf16.msra.mxu0 %v1071
    %1600 = vmatprep.subr.bf16.mxu0 %v1068
    %1601 = vmatpush2.bf16.msra.mxu0 %v1067
    %1602 = vmatprep.mubr.bf16.mxu0 %v159
    %1603 = vmatmul.mubr.bf16.gmra.mxu0 %v158
    %v1604 = vpop.f32.mrf.mxu0
    %v1605 = vadd.f32 %v1564, %v1604
    %v1606 = vpop.f32.mrf.mxu0
    %v1607 = vadd.f32 %v1566, %v1606
    %v1608 = vpop.f32.mrf.mxu0
    %v1609 = vpop.f32.mrf.mxu0
    %1610 = vdwg.mxu0
    %1611 = vmatprep.subr.bf16.mxu0 %v1128
    %1612 = vmatpush1.bf16.msra.mxu0 %v1127
    %1613 = vmatprep.subr.bf16.mxu0 %v1124
    %1614 = vmatpush1.bf16.msra.mxu0 %v1123
    %1615 = vmatprep.subr.bf16.mxu0 %v1120
    %1616 = vmatpush1.bf16.msra.mxu0 %v1119
    %1617 = vmatprep.subr.bf16.mxu0 %v1116
    %1618 = vmatpush1.bf16.msra.mxu0 %v1115
    %1619 = vmatprep.subr.bf16.mxu0 %v1112
    %1620 = vmatpush1.bf16.msra.mxu0 %v1111
    %1621 = vmatprep.subr.bf16.mxu0 %v1108
    %1622 = vmatpush1.bf16.msra.mxu0 %v1107
    %1623 = vmatprep.subr.bf16.mxu0 %v1104
    %1624 = vmatpush1.bf16.msra.mxu0 %v1103
    %1625 = vmatprep.subr.bf16.mxu0 %v1100
    %1626 = vmatpush1.bf16.msra.mxu0 %v1099
    %1627 = vmatprep.subr.bf16.mxu0 %v1160
    %1628 = vmatpush2.bf16.msra.mxu0 %v1159
    %1629 = vmatprep.subr.bf16.mxu0 %v1156
    %1630 = vmatpush2.bf16.msra.mxu0 %v1155
    %1631 = vmatprep.subr.bf16.mxu0 %v1152
    %1632 = vmatpush2.bf16.msra.mxu0 %v1151
    %1633 = vmatprep.subr.bf16.mxu0 %v1148
    %1634 = vmatpush2.bf16.msra.mxu0 %v1147
    %1635 = vmatprep.subr.bf16.mxu0 %v1144
    %1636 = vmatpush2.bf16.msra.mxu0 %v1143
    %1637 = vmatprep.subr.bf16.mxu0 %v1140
    %1638 = vmatpush2.bf16.msra.mxu0 %v1139
    %1639 = vmatprep.subr.bf16.mxu0 %v1136
    %1640 = vmatpush2.bf16.msra.mxu0 %v1135
    %1641 = vmatprep.subr.bf16.mxu0 %v1132
    %1642 = vmatpush2.bf16.msra.mxu0 %v1131
    %1643 = vmatprep.mubr.bf16.mxu0 %v161
    %1644 = vmatmul.mubr.bf16.gmra.mxu0 %v160
    %v1645 = vpop.f32.mrf.mxu0
    %v1646 = vadd.f32 %v1605, %v1645
    %v1647 = vpop.f32.mrf.mxu0
    %v1648 = vadd.f32 %v1607, %v1647
    %v1649 = vpop.f32.mrf.mxu0
    %v1650 = vpop.f32.mrf.mxu0
    %1651 = vdwg.mxu0
    %1652 = vmatprep.subr.bf16.mxu0 0
    %1653 = vmatpush1.bf16.msra.mxu0 0
    %1654 = vmatprep.subr.bf16.mxu0 0
    %1655 = vmatpush1.bf16.msra.mxu0 0
    %1656 = vmatprep.subr.bf16.mxu0 0
    %1657 = vmatpush1.bf16.msra.mxu0 0
    %1658 = vmatprep.subr.bf16.mxu0 0
    %1659 = vmatpush1.bf16.msra.mxu0 0
    %1660 = vmatprep.subr.bf16.mxu0 0
    %1661 = vmatpush1.bf16.msra.mxu0 0
    %1662 = vmatprep.subr.bf16.mxu0 0
    %1663 = vmatpush1.bf16.msra.mxu0 0
    %1664 = vmatprep.subr.bf16.mxu0 0
    %1665 = vmatpush1.bf16.msra.mxu0 0
    %1666 = vmatprep.subr.bf16.mxu0 %v1164
    %1667 = vmatpush1.bf16.msra.mxu0 %v1163
    %1668 = vmatprep.subr.bf16.mxu0 0
    %1669 = vmatpush2.bf16.msra.mxu0 0
    %1670 = vmatprep.subr.bf16.mxu0 0
    %1671 = vmatpush2.bf16.msra.mxu0 0
    %1672 = vmatprep.subr.bf16.mxu0 0
    %1673 = vmatpush2.bf16.msra.mxu0 0
    %1674 = vmatprep.subr.bf16.mxu0 0
    %1675 = vmatpush2.bf16.msra.mxu0 0
    %1676 = vmatprep.subr.bf16.mxu0 0
    %1677 = vmatpush2.bf16.msra.mxu0 0
    %1678 = vmatprep.subr.bf16.mxu0 0
    %1679 = vmatpush2.bf16.msra.mxu0 0
    %1680 = vmatprep.subr.bf16.mxu0 0
    %1681 = vmatpush2.bf16.msra.mxu0 0
    %1682 = vmatprep.subr.bf16.mxu0 0
    %1683 = vmatpush2.bf16.msra.mxu0 0
    %1684 = vmatprep.mubr.bf16.mxu0 0
    %1685 = vmatmul.mubr.bf16.gmra.mxu0 %v1363
    %v1686 = vpop.f32.mrf.mxu0
    %v1687 = vadd.f32 %v1646, %v1686
    %v1688 = vpop.f32.mrf.mxu0
    %v1689 = vadd.f32 %v1648, %v1688
    %v1690 = vpop.f32.mrf.mxu0
    %v1691 = vpop.f32.mrf.mxu0
    %1692 = vdwg.mxu0
    %v1693 = vmax.f32 %v1523, 0.0
    %v1694 = vmax.f32 %v1525, 0.0
    %v1695 = vmax.f32 %v1687, 0.0
    %v1696 = vmax.f32 %v1689, 0.0
    %v1697 = vpack.c.bf16 %v1693, %v1693
    %v1698 = vpack.c.bf16 %v1694, %v1694
    %v1699 = vpack.c.bf16 %v1695, %v1695
    %v1700 = vpack.c.bf16 %v1696, %v1696
    %v1701 = vld [vmem:[#allocation8] sm:$0xff]
    %v1702 = vld [vmem:[#allocation8 + $0x8] sm:$0xff]
    %v1703 = vld [vmem:[#allocation8 + $0x10] sm:$0xff]
    %v1704 = vld [vmem:[#allocation8 + $0x18] sm:$0xff]
    %v1705 = vld [vmem:[#allocation8 + $0x20] sm:$0xff]
    %v1706 = vld [vmem:[#allocation8 + $0x28] sm:$0xff]
    %v1707 = vld [vmem:[#allocation8 + $0x30] sm:$0xff]
    %v1708 = vld [vmem:[#allocation8 + $0x38] sm:$0xff]
    %v1709 = vld [vmem:[#allocation8 + $0x40] sm:$0xff]
    %v1710 = vld [vmem:[#allocation8 + $0x48] sm:$0xff]
    %v1711 = vld [vmem:[#allocation8 + $0x50] sm:$0xff]
    %v1712 = vld [vmem:[#allocation8 + $0x58] sm:$0xff]
    %v1713 = vld [vmem:[#allocation8 + $0x60] sm:$0xff]
    %v1714 = vld [vmem:[#allocation8 + $0x68] sm:$0xff]
    %v1715 = vld [vmem:[#allocation8 + $0x70] sm:$0xff]
    %v1716 = vld [vmem:[#allocation8 + $0x78] sm:$0xff]
    %v1717 = vld [vmem:[#allocation8 + $0x80] sm:$0xff]
    %v1718 = vld [vmem:[#allocation8 + $0x88] sm:$0xff]
    %v1719 = vld [vmem:[#allocation8 + $0x90] sm:$0xff]
    %v1720 = vld [vmem:[#allocation8 + $0x98] sm:$0xff]
    %v1721 = vld [vmem:[#allocation8 + $0xa0] sm:$0xff]
    %v1722 = vld [vmem:[#allocation8 + $0xa8] sm:$0xff]
    %v1723 = vld [vmem:[#allocation8 + $0xb0] sm:$0xff]
    %v1724 = vld [vmem:[#allocation8 + $0xb8] sm:$0xff]
    %v1725 = vld [vmem:[#allocation8 + $0xc0] sm:$0xff]
    %v1726 = vld [vmem:[#allocation8 + $0xc8] sm:$0xff]
    %v1727 = vld [vmem:[#allocation8 + $0xd0] sm:$0xff]
    %v1728 = vld [vmem:[#allocation8 + $0xd8] sm:$0xff]
    %v1729 = vld [vmem:[#allocation8 + $0xe0] sm:$0xff]
    %v1730 = vld [vmem:[#allocation8 + $0xe8] sm:$0xff]
    %v1731 = vld [vmem:[#allocation8 + $0xf0] sm:$0xff]
    %v1732 = vld [vmem:[#allocation8 + $0xf8] sm:$0xff]
    %v1733 = vld [vmem:[#allocation8 + $0x100] sm:$0xff]
    %v1734 = vld [vmem:[#allocation8 + $0x108] sm:$0xff]
    %v1735 = vld [vmem:[#allocation8 + $0x110] sm:$0xff]
    %v1736 = vld [vmem:[#allocation8 + $0x118] sm:$0xff]
    %v1737 = vld [vmem:[#allocation8 + $0x120] sm:$0xff]
    %v1738 = vld [vmem:[#allocation8 + $0x128] sm:$0xff]
    %v1739 = vld [vmem:[#allocation8 + $0x130] sm:$0xff]
    %v1740 = vld [vmem:[#allocation8 + $0x138] sm:$0xff]
    %v1741 = vld [vmem:[#allocation8 + $0x140] sm:$0xff]
    %v1742 = vld [vmem:[#allocation8 + $0x148] sm:$0xff]
    %v1743 = vld [vmem:[#allocation8 + $0x150] sm:$0xff]
    %v1744 = vld [vmem:[#allocation8 + $0x158] sm:$0xff]
    %v1745 = vld [vmem:[#allocation8 + $0x160] sm:$0xff]
    %v1746 = vld [vmem:[#allocation8 + $0x168] sm:$0xff]
    %v1747 = vld [vmem:[#allocation8 + $0x170] sm:$0xff]
    %v1748 = vld [vmem:[#allocation8 + $0x178] sm:$0xff]
    %v1749 = vld [vmem:[#allocation8 + $0x180] sm:$0xff]
    %v1750 = vld [vmem:[#allocation8 + $0x188] sm:$0xff]
    %v1751 = vld [vmem:[#allocation8 + $0x190] sm:$0xff]
    %v1752 = vld [vmem:[#allocation8 + $0x198] sm:$0xff]
    %v1753 = vld [vmem:[#allocation8 + $0x1a0] sm:$0xff]
    %v1754 = vld [vmem:[#allocation8 + $0x1a8] sm:$0xff]
    %v1755 = vld [vmem:[#allocation8 + $0x1b0] sm:$0xff]
    %v1756 = vld [vmem:[#allocation8 + $0x1b8] sm:$0xff]
    %v1757 = vld [vmem:[#allocation8 + $0x1c0] sm:$0xff]
    %v1758 = vld [vmem:[#allocation8 + $0x1c8] sm:$0xff]
    %v1759 = vld [vmem:[#allocation8 + $0x1d0] sm:$0xff]
    %v1760 = vld [vmem:[#allocation8 + $0x1d8] sm:$0xff]
    %v1761 = vld [vmem:[#allocation8 + $0x1e0] sm:$0xff]
    %v1762 = vld [vmem:[#allocation8 + $0x1e8] sm:$0xff]
    %v1763 = vld [vmem:[#allocation8 + $0x1f0] sm:$0xff]
    %v1764 = vld [vmem:[#allocation8 + $0x1f8] sm:$0xff]
    %v1765 = vld [vmem:[%s4] sm:$0x3]
    %v1767 = vlaneseq
    %v1768 = vshrl.u32 %v1767, 7
    %v1769 = vsub.s32 0, %v1768
    %v1770 = vrot.slane %v1765, %v1769
    %v1771 = vlaneseq
    %v1772 = vshrl.u32 %v1771, 7
    %v1773 = vsub.s32 1, %v1772
    %v1774 = vrot.slane %v1765, %v1773
    %v1841 = vunpack.c.l.b16 %v1701
    %v1842 = vunpack.c.h.b16 %v1701
    %v1843 = vunpack.c.l.b16 %v1702
    %v1844 = vunpack.c.h.b16 %v1702
    %v1845 = vunpack.c.l.b16 %v1703
    %v1846 = vunpack.c.h.b16 %v1703
    %v1847 = vunpack.c.l.b16 %v1704
    %v1848 = vunpack.c.h.b16 %v1704
    %v1849 = vunpack.c.l.b16 %v1705
    %v1850 = vunpack.c.h.b16 %v1705
    %v1851 = vunpack.c.l.b16 %v1706
    %v1852 = vunpack.c.h.b16 %v1706
    %v1853 = vunpack.c.l.b16 %v1707
    %v1854 = vunpack.c.h.b16 %v1707
    %v1855 = vunpack.c.l.b16 %v1708
    %v1856 = vunpack.c.h.b16 %v1708
    %v1857 = vunpack.c.l.b16 %v1709
    %v1858 = vunpack.c.h.b16 %v1709
    %v1859 = vunpack.c.l.b16 %v1710
    %v1860 = vunpack.c.h.b16 %v1710
    %v1861 = vunpack.c.l.b16 %v1711
    %v1862 = vunpack.c.h.b16 %v1711
    %v1863 = vunpack.c.l.b16 %v1712
    %v1864 = vunpack.c.h.b16 %v1712
    %v1865 = vunpack.c.l.b16 %v1713
    %v1866 = vunpack.c.h.b16 %v1713
    %v1867 = vunpack.c.l.b16 %v1714
    %v1868 = vunpack.c.h.b16 %v1714
    %v1869 = vunpack.c.l.b16 %v1715
    %v1870 = vunpack.c.h.b16 %v1715
    %v1871 = vunpack.c.l.b16 %v1716
    %v1872 = vunpack.c.h.b16 %v1716
    %v1873 = vunpack.c.l.b16 %v1717
    %v1874 = vunpack.c.h.b16 %v1717
    %v1875 = vunpack.c.l.b16 %v1718
    %v1876 = vunpack.c.h.b16 %v1718
    %v1877 = vunpack.c.l.b16 %v1719
    %v1878 = vunpack.c.h.b16 %v1719
    %v1879 = vunpack.c.l.b16 %v1720
    %v1880 = vunpack.c.h.b16 %v1720
    %v1881 = vunpack.c.l.b16 %v1721
    %v1882 = vunpack.c.h.b16 %v1721
    %v1883 = vunpack.c.l.b16 %v1722
    %v1884 = vunpack.c.h.b16 %v1722
    %v1885 = vunpack.c.l.b16 %v1723
    %v1886 = vunpack.c.h.b16 %v1723
    %v1887 = vunpack.c.l.b16 %v1724
    %v1888 = vunpack.c.h.b16 %v1724
    %v1889 = vunpack.c.l.b16 %v1725
    %v1890 = vunpack.c.h.b16 %v1725
    %v1891 = vunpack.c.l.b16 %v1726
    %v1892 = vunpack.c.h.b16 %v1726
    %v1893 = vunpack.c.l.b16 %v1727
    %v1894 = vunpack.c.h.b16 %v1727
    %v1895 = vunpack.c.l.b16 %v1728
    %v1896 = vunpack.c.h.b16 %v1728
    %v1897 = vunpack.c.l.b16 %v1729
    %v1898 = vunpack.c.h.b16 %v1729
    %v1899 = vunpack.c.l.b16 %v1730
    %v1900 = vunpack.c.h.b16 %v1730
    %v1901 = vunpack.c.l.b16 %v1731
    %v1902 = vunpack.c.h.b16 %v1731
    %v1903 = vunpack.c.l.b16 %v1732
    %v1904 = vunpack.c.h.b16 %v1732
    %v1905 = vunpack.c.l.b16 %v1733
    %v1906 = vunpack.c.h.b16 %v1733
    %v1907 = vunpack.c.l.b16 %v1734
    %v1908 = vunpack.c.h.b16 %v1734
    %v1909 = vunpack.c.l.b16 %v1735
    %v1910 = vunpack.c.h.b16 %v1735
    %v1911 = vunpack.c.l.b16 %v1736
    %v1912 = vunpack.c.h.b16 %v1736
    %v1913 = vunpack.c.l.b16 %v1737
    %v1914 = vunpack.c.h.b16 %v1737
    %v1915 = vunpack.c.l.b16 %v1738
    %v1916 = vunpack.c.h.b16 %v1738
    %v1917 = vunpack.c.l.b16 %v1739
    %v1918 = vunpack.c.h.b16 %v1739
    %v1919 = vunpack.c.l.b16 %v1740
    %v1920 = vunpack.c.h.b16 %v1740
    %v1921 = vunpack.c.l.b16 %v1741
    %v1922 = vunpack.c.h.b16 %v1741
    %v1923 = vunpack.c.l.b16 %v1742
    %v1924 = vunpack.c.h.b16 %v1742
    %v1925 = vunpack.c.l.b16 %v1743
    %v1926 = vunpack.c.h.b16 %v1743
    %v1927 = vunpack.c.l.b16 %v1744
    %v1928 = vunpack.c.h.b16 %v1744
    %v1929 = vunpack.c.l.b16 %v1745
    %v1930 = vunpack.c.h.b16 %v1745
    %v1931 = vunpack.c.l.b16 %v1746
    %v1932 = vunpack.c.h.b16 %v1746
    %v1933 = vunpack.c.l.b16 %v1747
    %v1934 = vunpack.c.h.b16 %v1747
    %v1935 = vunpack.c.l.b16 %v1748
    %v1936 = vunpack.c.h.b16 %v1748
    %v1937 = vunpack.c.l.b16 %v1749
    %v1938 = vunpack.c.h.b16 %v1749
    %v1939 = vunpack.c.l.b16 %v1750
    %v1940 = vunpack.c.h.b16 %v1750
    %v1941 = vunpack.c.l.b16 %v1751
    %v1942 = vunpack.c.h.b16 %v1751
    %v1943 = vunpack.c.l.b16 %v1752
    %v1944 = vunpack.c.h.b16 %v1752
    %v1945 = vunpack.c.l.b16 %v1753
    %v1946 = vunpack.c.h.b16 %v1753
    %v1947 = vunpack.c.l.b16 %v1754
    %v1948 = vunpack.c.h.b16 %v1754
    %v1949 = vunpack.c.l.b16 %v1755
    %v1950 = vunpack.c.h.b16 %v1755
    %v1951 = vunpack.c.l.b16 %v1756
    %v1952 = vunpack.c.h.b16 %v1756
    %v1953 = vunpack.c.l.b16 %v1757
    %v1954 = vunpack.c.h.b16 %v1757
    %v1955 = vunpack.c.l.b16 %v1758
    %v1956 = vunpack.c.h.b16 %v1758
    %v1957 = vunpack.c.l.b16 %v1759
    %v1958 = vunpack.c.h.b16 %v1759
    %v1959 = vunpack.c.l.b16 %v1760
    %v1960 = vunpack.c.h.b16 %v1760
    %v1961 = vunpack.c.l.b16 %v1761
    %v1962 = vunpack.c.h.b16 %v1761
    %v1963 = vunpack.c.l.b16 %v1762
    %v1964 = vunpack.c.h.b16 %v1762
    %v1965 = vunpack.c.l.b16 %v1763
    %v1966 = vunpack.c.h.b16 %v1763
    %v1967 = vunpack.c.l.b16 %v1764
    %v1968 = vunpack.c.h.b16 %v1764
    %v1969 = vpack.c.b16 %v1843, %v1841
    %v1970 = vpack.c.b16 %v1844, %v1842
    %v1971 = vpack.c.b16 %v1847, %v1845
    %v1972 = vpack.c.b16 %v1848, %v1846
    %v1973 = vpack.c.b16 %v1851, %v1849
    %v1974 = vpack.c.b16 %v1852, %v1850
    %v1975 = vpack.c.b16 %v1855, %v1853
    %v1976 = vpack.c.b16 %v1856, %v1854
    %v1977 = vpack.c.b16 %v1859, %v1857
    %v1978 = vpack.c.b16 %v1860, %v1858
    %v1979 = vpack.c.b16 %v1863, %v1861
    %v1980 = vpack.c.b16 %v1864, %v1862
    %v1981 = vpack.c.b16 %v1867, %v1865
    %v1982 = vpack.c.b16 %v1868, %v1866
    %v1983 = vpack.c.b16 %v1871, %v1869
    %v1984 = vpack.c.b16 %v1872, %v1870
    %v1985 = vpack.c.b16 %v1875, %v1873
    %v1986 = vpack.c.b16 %v1876, %v1874
    %v1987 = vpack.c.b16 %v1879, %v1877
    %v1988 = vpack.c.b16 %v1880, %v1878
    %v1989 = vpack.c.b16 %v1883, %v1881
    %v1990 = vpack.c.b16 %v1884, %v1882
    %v1991 = vpack.c.b16 %v1887, %v1885
    %v1992 = vpack.c.b16 %v1888, %v1886
    %v1993 = vpack.c.b16 %v1891, %v1889
    %v1994 = vpack.c.b16 %v1892, %v1890
    %v1995 = vpack.c.b16 %v1895, %v1893
    %v1996 = vpack.c.b16 %v1896, %v1894
    %v1997 = vpack.c.b16 %v1899, %v1897
    %v1998 = vpack.c.b16 %v1900, %v1898
    %v1999 = vpack.c.b16 %v1903, %v1901
    %v2000 = vpack.c.b16 %v1904, %v1902
    %v2001 = vpack.c.b16 %v1907, %v1905
    %v2002 = vpack.c.b16 %v1908, %v1906
    %v2003 = vpack.c.b16 %v1911, %v1909
    %v2004 = vpack.c.b16 %v1912, %v1910
    %v2005 = vpack.c.b16 %v1915, %v1913
    %v2006 = vpack.c.b16 %v1916, %v1914
    %v2007 = vpack.c.b16 %v1919, %v1917
    %v2008 = vpack.c.b16 %v1920, %v1918
    %v2009 = vpack.c.b16 %v1923, %v1921
    %v2010 = vpack.c.b16 %v1924, %v1922
    %v2011 = vpack.c.b16 %v1927, %v1925
    %v2012 = vpack.c.b16 %v1928, %v1926
    %v2013 = vpack.c.b16 %v1931, %v1929
    %v2014 = vpack.c.b16 %v1932, %v1930
    %v2015 = vpack.c.b16 %v1935, %v1933
    %v2016 = vpack.c.b16 %v1936, %v1934
    %v2017 = vpack.c.b16 %v1939, %v1937
    %v2018 = vpack.c.b16 %v1940, %v1938
    %v2019 = vpack.c.b16 %v1943, %v1941
    %v2020 = vpack.c.b16 %v1944, %v1942
    %v2021 = vpack.c.b16 %v1947, %v1945
    %v2022 = vpack.c.b16 %v1948, %v1946
    %v2023 = vpack.c.b16 %v1951, %v1949
    %v2024 = vpack.c.b16 %v1952, %v1950
    %v2025 = vpack.c.b16 %v1955, %v1953
    %v2026 = vpack.c.b16 %v1956, %v1954
    %v2027 = vpack.c.b16 %v1959, %v1957
    %v2028 = vpack.c.b16 %v1960, %v1958
    %v2029 = vpack.c.b16 %v1963, %v1961
    %v2030 = vpack.c.b16 %v1964, %v1962
    %v2031 = vpack.c.b16 %v1967, %v1965
    %v2032 = vpack.c.b16 %v1968, %v1966
    %2097 = vmatprep.subr.bf16.mxu0 %v1984
    %2098 = vmatpush1.bf16.msra.mxu0 %v1983
    %2099 = vmatprep.subr.bf16.mxu0 %v1982
    %2100 = vmatpush1.bf16.msra.mxu0 %v1981
    %2101 = vmatprep.subr.bf16.mxu0 %v1980
    %2102 = vmatpush1.bf16.msra.mxu0 %v1979
    %2103 = vmatprep.subr.bf16.mxu0 %v1978
    %2104 = vmatpush1.bf16.msra.mxu0 %v1977
    %2105 = vmatprep.subr.bf16.mxu0 %v1976
    %2106 = vmatpush1.bf16.msra.mxu0 %v1975
    %2107 = vmatprep.subr.bf16.mxu0 %v1974
    %2108 = vmatpush1.bf16.msra.mxu0 %v1973
    %2109 = vmatprep.subr.bf16.mxu0 %v1972
    %2110 = vmatpush1.bf16.msra.mxu0 %v1971
    %2111 = vmatprep.subr.bf16.mxu0 %v1970
    %2112 = vmatpush1.bf16.msra.mxu0 %v1969
    %2113 = vmatprep.subr.bf16.mxu0 %v2000
    %2114 = vmatpush2.bf16.msra.mxu0 %v1999
    %2115 = vmatprep.subr.bf16.mxu0 %v1998
    %2116 = vmatpush2.bf16.msra.mxu0 %v1997
    %2117 = vmatprep.subr.bf16.mxu0 %v1996
    %2118 = vmatpush2.bf16.msra.mxu0 %v1995
    %2119 = vmatprep.subr.bf16.mxu0 %v1994
    %2120 = vmatpush2.bf16.msra.mxu0 %v1993
    %2121 = vmatprep.subr.bf16.mxu0 %v1992
    %2122 = vmatpush2.bf16.msra.mxu0 %v1991
    %2123 = vmatprep.subr.bf16.mxu0 %v1990
    %2124 = vmatpush2.bf16.msra.mxu0 %v1989
    %2125 = vmatprep.subr.bf16.mxu0 %v1988
    %2126 = vmatpush2.bf16.msra.mxu0 %v1987
    %2127 = vmatprep.subr.bf16.mxu0 %v1986
    %2128 = vmatpush2.bf16.msra.mxu0 %v1985
    %2129 = vmatprep.mubr.bf16.mxu0 %v1698
    %2130 = vmatmul.mubr.bf16.gmra.mxu0 %v1697
    %v2131 = vpop.f32.mrf.mxu0
    %v2132 = vadd.f32 %v1770, %v2131
    %v2133 = vpop.f32.mrf.mxu0
    %v2134 = vadd.f32 %v1774, %v2133
    %v2135 = vpop.f32.mrf.mxu0
    %v2136 = vpop.f32.mrf.mxu0
    %2137 = vdwg.mxu0
    %2138 = vmatprep.subr.bf16.mxu0 %v2016
    %2139 = vmatpush1.bf16.msra.mxu0 %v2015
    %2140 = vmatprep.subr.bf16.mxu0 %v2014
    %2141 = vmatpush1.bf16.msra.mxu0 %v2013
    %2142 = vmatprep.subr.bf16.mxu0 %v2012
    %2143 = vmatpush1.bf16.msra.mxu0 %v2011
    %2144 = vmatprep.subr.bf16.mxu0 %v2010
    %2145 = vmatpush1.bf16.msra.mxu0 %v2009
    %2146 = vmatprep.subr.bf16.mxu0 %v2008
    %2147 = vmatpush1.bf16.msra.mxu0 %v2007
    %2148 = vmatprep.subr.bf16.mxu0 %v2006
    %2149 = vmatpush1.bf16.msra.mxu0 %v2005
    %2150 = vmatprep.subr.bf16.mxu0 %v2004
    %2151 = vmatpush1.bf16.msra.mxu0 %v2003
    %2152 = vmatprep.subr.bf16.mxu0 %v2002
    %2153 = vmatpush1.bf16.msra.mxu0 %v2001
    %2154 = vmatprep.subr.bf16.mxu0 %v2032
    %2155 = vmatpush2.bf16.msra.mxu0 %v2031
    %2156 = vmatprep.subr.bf16.mxu0 %v2030
    %2157 = vmatpush2.bf16.msra.mxu0 %v2029
    %2158 = vmatprep.subr.bf16.mxu0 %v2028
    %2159 = vmatpush2.bf16.msra.mxu0 %v2027
    %2160 = vmatprep.subr.bf16.mxu0 %v2026
    %2161 = vmatpush2.bf16.msra.mxu0 %v2025
    %2162 = vmatprep.subr.bf16.mxu0 %v2024
    %2163 = vmatpush2.bf16.msra.mxu0 %v2023
    %2164 = vmatprep.subr.bf16.mxu0 %v2022
    %2165 = vmatpush2.bf16.msra.mxu0 %v2021
    %2166 = vmatprep.subr.bf16.mxu0 %v2020
    %2167 = vmatpush2.bf16.msra.mxu0 %v2019
    %2168 = vmatprep.subr.bf16.mxu0 %v2018
    %2169 = vmatpush2.bf16.msra.mxu0 %v2017
    %2170 = vmatprep.mubr.bf16.mxu0 %v1700
    %2171 = vmatmul.mubr.bf16.gmra.mxu0 %v1699
    %v2172 = vpop.f32.mrf.mxu0
    %v2173 = vadd.f32 %v2132, %v2172
    %v2174 = vpop.f32.mrf.mxu0
    %v2175 = vadd.f32 %v2134, %v2174
    %v2176 = vpop.f32.mrf.mxu0
    %v2177 = vpop.f32.mrf.mxu0
    %2178 = vdwg.mxu0
    %v2179 = vmax.f32 %v2173, 0.0
    %v2180 = vmax.f32 %v2175, 0.0
    %v2181 = vpack.c.bf16 %v2179, %v2179
    %v2182 = vpack.c.bf16 %v2180, %v2180
    %v2183 = vld [vmem:[#allocation10] sm:$0xf]
    %v2184 = vld [vmem:[#allocation10 + $0x4] sm:$0xf]
    %v2185 = vld [vmem:[#allocation10 + $0x8] sm:$0xf]
    %v2186 = vld [vmem:[#allocation10 + $0xc] sm:$0xf]
    %v2187 = vld [vmem:[#allocation10 + $0x10] sm:$0xf]
    %v2188 = vld [vmem:[#allocation10 + $0x14] sm:$0xf]
    %v2189 = vld [vmem:[#allocation10 + $0x18] sm:$0xf]
    %v2190 = vld [vmem:[#allocation10 + $0x1c] sm:$0xf]
    %v2191 = vld [vmem:[#allocation10 + $0x20] sm:$0xf]
    %v2192 = vld [vmem:[#allocation10 + $0x24] sm:$0xf]
    %v2193 = vld [vmem:[#allocation10 + $0x28] sm:$0xf]
    %v2194 = vld [vmem:[#allocation10 + $0x2c] sm:$0xf]
    %v2195 = vld [vmem:[#allocation10 + $0x30] sm:$0xf]
    %v2196 = vld [vmem:[#allocation10 + $0x34] sm:$0xf]
    %v2197 = vld [vmem:[#allocation10 + $0x38] sm:$0xf]
    %v2198 = vld [vmem:[#allocation10 + $0x3c] sm:$0xf]
    %v2199 = vld [vmem:[#allocation10 + $0x40] sm:$0xf]
    %v2200 = vld [vmem:[#allocation10 + $0x44] sm:$0xf]
    %v2201 = vld [vmem:[#allocation10 + $0x48] sm:$0xf]
    %v2202 = vld [vmem:[#allocation10 + $0x4c] sm:$0xf]
    %v2203 = vld [vmem:[#allocation10 + $0x50] sm:$0xf]
    %v2204 = vld [vmem:[#allocation10 + $0x54] sm:$0xf]
    %v2205 = vld [vmem:[#allocation10 + $0x58] sm:$0xf]
    %v2206 = vld [vmem:[#allocation10 + $0x5c] sm:$0xf]
    %v2207 = vld [vmem:[#allocation10 + $0x60] sm:$0xf]
    %v2208 = vld [vmem:[#allocation10 + $0x64] sm:$0xf]
    %v2209 = vld [vmem:[#allocation10 + $0x68] sm:$0xf]
    %v2210 = vld [vmem:[#allocation10 + $0x6c] sm:$0xf]
    %v2211 = vld [vmem:[#allocation10 + $0x70] sm:$0xf]
    %v2212 = vld [vmem:[#allocation10 + $0x74] sm:$0xf]
    %v2213 = vld [vmem:[#allocation10 + $0x78] sm:$0xf]
    %v2214 = vld [vmem:[#allocation10 + $0x7c] sm:$0xf]
    %v2215 = vld [vmem:[%s6] sm:$0x1]
    %v2217 = vlaneseq
    %v2218 = vshrl.u32 %v2217, 7
    %v2219 = vsub.s32 0, %v2218
    %v2220 = vrot.slane %v2215, %v2219
    %v2254 = vunpack.c.l.b16 %v2183
    %v2255 = vunpack.c.l.b16 %v2184
    %v2256 = vunpack.c.l.b16 %v2185
    %v2257 = vunpack.c.l.b16 %v2186
    %v2258 = vunpack.c.l.b16 %v2187
    %v2259 = vunpack.c.l.b16 %v2188
    %v2260 = vunpack.c.l.b16 %v2189
    %v2261 = vunpack.c.l.b16 %v2190
    %v2262 = vunpack.c.l.b16 %v2191
    %v2263 = vunpack.c.l.b16 %v2192
    %v2264 = vunpack.c.l.b16 %v2193
    %v2265 = vunpack.c.l.b16 %v2194
    %v2266 = vunpack.c.l.b16 %v2195
    %v2267 = vunpack.c.l.b16 %v2196
    %v2268 = vunpack.c.l.b16 %v2197
    %v2269 = vunpack.c.l.b16 %v2198
    %v2270 = vunpack.c.l.b16 %v2199
    %v2271 = vunpack.c.l.b16 %v2200
    %v2272 = vunpack.c.l.b16 %v2201
    %v2273 = vunpack.c.l.b16 %v2202
    %v2274 = vunpack.c.l.b16 %v2203
    %v2275 = vunpack.c.l.b16 %v2204
    %v2276 = vunpack.c.l.b16 %v2205
    %v2277 = vunpack.c.l.b16 %v2206
    %v2278 = vunpack.c.l.b16 %v2207
    %v2279 = vunpack.c.l.b16 %v2208
    %v2280 = vunpack.c.l.b16 %v2209
    %v2281 = vunpack.c.l.b16 %v2210
    %v2282 = vunpack.c.l.b16 %v2211
    %v2283 = vunpack.c.l.b16 %v2212
    %v2284 = vunpack.c.l.b16 %v2213
    %v2285 = vunpack.c.l.b16 %v2214
    %v2286 = vpack.c.b16 %v2255, %v2254
    %v2287 = vpack.c.b16 %v2257, %v2256
    %v2288 = vpack.c.b16 %v2259, %v2258
    %v2289 = vpack.c.b16 %v2261, %v2260
    %v2290 = vpack.c.b16 %v2263, %v2262
    %v2291 = vpack.c.b16 %v2265, %v2264
    %v2292 = vpack.c.b16 %v2267, %v2266
    %v2293 = vpack.c.b16 %v2269, %v2268
    %v2294 = vpack.c.b16 %v2271, %v2270
    %v2295 = vpack.c.b16 %v2273, %v2272
    %v2296 = vpack.c.b16 %v2275, %v2274
    %v2297 = vpack.c.b16 %v2277, %v2276
    %v2298 = vpack.c.b16 %v2279, %v2278
    %v2299 = vpack.c.b16 %v2281, %v2280
    %v2300 = vpack.c.b16 %v2283, %v2282
    %v2301 = vpack.c.b16 %v2285, %v2284
    %2318 = vmatprep.subr.bf16.mxu0 0
    %2319 = vmatpush1.bf16.msra.mxu0 %v2293
    %2320 = vmatprep.subr.bf16.mxu0 0
    %2321 = vmatpush1.bf16.msra.mxu0 %v2292
    %2322 = vmatprep.subr.bf16.mxu0 0
    %2323 = vmatpush1.bf16.msra.mxu0 %v2291
    %2324 = vmatprep.subr.bf16.mxu0 0
    %2325 = vmatpush1.bf16.msra.mxu0 %v2290
    %2326 = vmatprep.subr.bf16.mxu0 0
    %2327 = vmatpush1.bf16.msra.mxu0 %v2289
    %2328 = vmatprep.subr.bf16.mxu0 0
    %2329 = vmatpush1.bf16.msra.mxu0 %v2288
    %2330 = vmatprep.subr.bf16.mxu0 0
    %2331 = vmatpush1.bf16.msra.mxu0 %v2287
    %2332 = vmatprep.subr.bf16.mxu0 0
    %2333 = vmatpush1.bf16.msra.mxu0 %v2286
    %2334 = vmatprep.subr.bf16.mxu0 0
    %2335 = vmatpush2.bf16.msra.mxu0 %v2301
    %2336 = vmatprep.subr.bf16.mxu0 0
    %2337 = vmatpush2.bf16.msra.mxu0 %v2300
    %2338 = vmatprep.subr.bf16.mxu0 0
    %2339 = vmatpush2.bf16.msra.mxu0 %v2299
    %2340 = vmatprep.subr.bf16.mxu0 0
    %2341 = vmatpush2.bf16.msra.mxu0 %v2298
    %2342 = vmatprep.subr.bf16.mxu0 0
    %2343 = vmatpush2.bf16.msra.mxu0 %v2297
    %2344 = vmatprep.subr.bf16.mxu0 0
    %2345 = vmatpush2.bf16.msra.mxu0 %v2296
    %2346 = vmatprep.subr.bf16.mxu0 0
    %2347 = vmatpush2.bf16.msra.mxu0 %v2295
    %2348 = vmatprep.subr.bf16.mxu0 0
    %2349 = vmatpush2.bf16.msra.mxu0 %v2294
    %2350 = vmatprep.mubr.bf16.mxu0 %v2182
    %2351 = vmatmul.mubr.bf16.gmra.mxu0 %v2181
    %v2352 = vpop.f32.mrf.mxu0
    %v2353 = vadd.f32 %v2220, %v2352
    %v2354 = vpop.f32.mrf.mxu0
    %v2355 = vpop.f32.mrf.mxu0
    %v2356 = vpop.f32.mrf.mxu0
    %2357 = vdwg.mxu0
    %v2358 = vmax.f32 %v2353, 0.0
    %v2359 = vpack.c.bf16 %v2358, %v2358
    %v2360 = vld [vmem:[#allocation11] sm:$0xf]
    %v2361 = vld [vmem:[#allocation11 + $0x4] sm:$0xf]
    %v2362 = vld [vmem:[#allocation11 + $0x8] sm:$0xf]
    %v2363 = vld [vmem:[#allocation11 + $0xc] sm:$0xf]
    %v2364 = vld [vmem:[#allocation11 + $0x10] sm:$0xf]
    %v2365 = vld [vmem:[#allocation11 + $0x14] sm:$0xf]
    %v2366 = vld [vmem:[#allocation11 + $0x18] sm:$0xf]
    %v2367 = vld [vmem:[#allocation11 + $0x1c] sm:$0xf]
    %v2368 = vld [vmem:[#allocation11 + $0x20] sm:$0xf]
    %v2369 = vld [vmem:[#allocation11 + $0x24] sm:$0xf]
    %v2370 = vld [vmem:[#allocation11 + $0x28] sm:$0xf]
    %v2371 = vld [vmem:[#allocation11 + $0x2c] sm:$0xf]
    %v2372 = vld [vmem:[#allocation11 + $0x30] sm:$0xf]
    %v2373 = vld [vmem:[#allocation11 + $0x34] sm:$0xf]
    %v2374 = vld [vmem:[#allocation11 + $0x38] sm:$0xf]
    %v2375 = vld [vmem:[#allocation11 + $0x3c] sm:$0xf]
    %v2376 = vld [vmem:[%s8] sm:$0x1]
    %v2378 = vlaneseq
    %v2379 = vshrl.u32 %v2378, 7
    %v2380 = vsub.s32 0, %v2379
    %v2381 = vrot.slane %v2376, %v2380
    %v2399 = vunpack.c.l.b16 %v2360
    %v2400 = vunpack.c.l.b16 %v2361
    %v2401 = vunpack.c.l.b16 %v2362
    %v2402 = vunpack.c.l.b16 %v2363
    %v2403 = vunpack.c.l.b16 %v2364
    %v2404 = vunpack.c.l.b16 %v2365
    %v2405 = vunpack.c.l.b16 %v2366
    %v2406 = vunpack.c.l.b16 %v2367
    %v2407 = vunpack.c.l.b16 %v2368
    %v2408 = vunpack.c.l.b16 %v2369
    %v2409 = vunpack.c.l.b16 %v2370
    %v2410 = vunpack.c.l.b16 %v2371
    %v2411 = vunpack.c.l.b16 %v2372
    %v2412 = vunpack.c.l.b16 %v2373
    %v2413 = vunpack.c.l.b16 %v2374
    %v2414 = vunpack.c.l.b16 %v2375
    %v2415 = vpack.c.b16 %v2400, %v2399
    %v2416 = vpack.c.b16 %v2402, %v2401
    %v2417 = vpack.c.b16 %v2404, %v2403
    %v2418 = vpack.c.b16 %v2406, %v2405
    %v2419 = vpack.c.b16 %v2408, %v2407
    %v2420 = vpack.c.b16 %v2410, %v2409
    %v2421 = vpack.c.b16 %v2412, %v2411
    %v2422 = vpack.c.b16 %v2414, %v2413
    %2431 = vmatprep.subr.bf16.mxu0 0
    %2432 = vmatpush1.bf16.msra.mxu0 %v2422
    %2433 = vmatprep.subr.bf16.mxu0 0
    %2434 = vmatpush1.bf16.msra.mxu0 %v2421
    %2435 = vmatprep.subr.bf16.mxu0 0
    %2436 = vmatpush1.bf16.msra.mxu0 %v2420
    %2437 = vmatprep.subr.bf16.mxu0 0
    %2438 = vmatpush1.bf16.msra.mxu0 %v2419
    %2439 = vmatprep.subr.bf16.mxu0 0
    %2440 = vmatpush1.bf16.msra.mxu0 %v2418
    %2441 = vmatprep.subr.bf16.mxu0 0
    %2442 = vmatpush1.bf16.msra.mxu0 %v2417
    %2443 = vmatprep.subr.bf16.mxu0 0
    %2444 = vmatpush1.bf16.msra.mxu0 %v2416
    %2445 = vmatprep.subr.bf16.mxu0 0
    %2446 = vmatpush1.bf16.msra.mxu0 %v2415
    %2447 = vmatprep.subr.bf16.mxu0 0
    %2448 = vmatpush2.bf16.msra.mxu0 0
    %2449 = vmatprep.subr.bf16.mxu0 0
    %2450 = vmatpush2.bf16.msra.mxu0 0
    %2451 = vmatprep.subr.bf16.mxu0 0
    %2452 = vmatpush2.bf16.msra.mxu0 0
    %2453 = vmatprep.subr.bf16.mxu0 0
    %2454 = vmatpush2.bf16.msra.mxu0 0
    %2455 = vmatprep.subr.bf16.mxu0 0
    %2456 = vmatpush2.bf16.msra.mxu0 0
    %2457 = vmatprep.subr.bf16.mxu0 0
    %2458 = vmatpush2.bf16.msra.mxu0 0
    %2459 = vmatprep.subr.bf16.mxu0 0
    %2460 = vmatpush2.bf16.msra.mxu0 0
    %2461 = vmatprep.subr.bf16.mxu0 0
    %2462 = vmatpush2.bf16.msra.mxu0 0
    %2463 = vmatprep.mubr.bf16.mxu0 0
    %2464 = vmatmul.mubr.bf16.gmra.mxu0 %v2359
    %v2465 = vpop.f32.mrf.mxu0
    %v2466 = vadd.f32 %v2381, %v2465
    %v2467 = vpop.f32.mrf.mxu0
    %v2468 = vpop.f32.mrf.mxu0
    %v2469 = vpop.f32.mrf.mxu0
    %2470 = vdwg.mxu0
    %2471 = vst [vmem:[#allocation13] sm:$0x3] %v2466
    // Predicated region
    $region62: #{tpu_custom_call.1} parent=1 // pred_check
      _
    $region63: #{tpu_custom_call.1} parent=1 // pred_check_branch
      %2473 = sbr.rel (0) target = $region65
    $region64: #{tpu_custom_call.1} parent=1 // pred_region
      %s2475 = ssub.s32 32, 32
      %2476 = vsyncadd [#allocation4], %s2475
      %s2478 = sshll.u32 [#allocation13], 4
      %s2479 = int_to_ptr.vmem [resolvable:$true] %s2478
      %2481 = dma.vmem_to_hbm [thread:$0]  %s2479, 32, %s9, [#allocation4]
    $region65: #{tpu_custom_call.1} parent=1 // pred_fallthru
      _
    // Predicated region
    $region66: #{tpu_custom_call.1} parent=1 // pred_check
      _
    $region67: #{tpu_custom_call.1} parent=1 // pred_check_branch
      %2483 = sbr.rel (0) target = $region69
    $region68: #{tpu_custom_call.1} parent=1 // pred_region
      %2484 = dma.done [#allocation4], 32
    $region69: #{tpu_custom_call.1} parent=1 // pred_fallthru
      _
    %2485 = vsyncpa [#allocation3], 1
    %2486 = vsyncpa [#allocation6], 1
    %2487 = vsyncpa [#allocation9], 1
    %2488 = vsyncpa [#allocation12], 1
    %2489 = vsyncpa [#allocation4], 1

</llo_original>
